<compile_context>
chip_gen: v6e
topology: v6e:2x2x1
jax: 0.10.0
libtpu: 0.0.40
codegen_flags: <defaults>
</compile_context>

<pallas_src>
import jax
import jax.numpy as jnp
from jax.experimental import pallas as pl
from jax.experimental.pallas import tpu as pltpu

INPUT_NUM = 1      # each GRU step consumes a single scalar x_i
HIDDEN_NUM = 32
OUTPUT_NUM = 4
NUM_CELLS = 7
FEAT_DIM = 462
H0_DIM = 34


# ---------------------------------------------------------------------------
# Pallas kernel
# ---------------------------------------------------------------------------
def model_kernel(sc_ref,        # SMEM (2,)       [restrict, number]
                 xt_ref,        # VMEM (7, 1)
                 pro_in_ref,    # VMEM (1, 496)   [feature | h0]
                 pro_w_ref,     # VMEM (496, 4H)  [W_pro | W_pro @ W_hh0]
                 pro_b_ref,     # VMEM (1, 4H)    [b_pro | b_pro @ W_hh0 + b_hh0]
                 gru_pk_ref,    # VMEM (3, 7, 3H) [W_ih (squeezed), b_comb, b_hh]
                 gru_whh_ref,   # VMEM (7, H, 3H)
                 out_pk_ref,    # VMEM (H+3, O)   rows: [W_h | w_restrict | w_number | bias]
                 y_ref):        # VMEM (1, O)
    H = HIDDEN_NUM
    H2 = 2 * H

    # Prologue: ONE (1,496)x(496,128) MXU matvec producing both
    #   hid = [feat | h0] @ W_pro + b_pro                       (lanes [:H])
    #   gh0 = hid @ W_hh0 + b_hh0   (folded offline)            (lanes [H:])
    pro = jnp.dot(pro_in_ref[...], pro_w_ref[...],
                  preferred_element_type=jnp.float32) + pro_b_ref[...]
    hid = pro[:, :H]

    # Hoisted input-gate projections (VPU, independent of the serial chain):
    #   gi_all[c] = x_c * W_ih_c + b_comb_c                     -> (7, 3H)
    # b_comb already contains b_hh's r|z part for cells 1..6 (offline fold).
    gi_all = xt_ref[...] * gru_pk_ref[0] + gru_pk_ref[1]
    bhh_all = gru_pk_ref[2]                                     # (7, 3H)

    # 7 chained GRU cells (statically unrolled, inherently serial).
    for c in range(NUM_CELLS):
        gi = gi_all[c:c + 1, :]                                 # (1, 3H)
        if c == 0:
            # gh0 came straight out of the prologue matmul (full b_hh0 included).
            gh_rz = pro[:, H:H + H2]
            gh_n = pro[:, H + H2:]
        else:
            gh = jnp.dot(hid, gru_whh_ref[c],
                         preferred_element_type=jnp.float32)    # no bias add on rz path
            gh_rz = gh[:, :H2]
            gh_n = gh[:, H2:] + bhh_all[c:c + 1, H2:]
        # fused r|z sigmoid over the contiguous first 2H lanes (one EUP call)
        rz = jax.nn.sigmoid(gi[:, :H2] + gh_rz)
        r = rz[:, :H]
        z = rz[:, H:]
        # PyTorch GRUCell: n = tanh(i_n + r * (W_hn h + b_hn))
        n = jnp.tanh(gi[:, H2:] + r * gh_n)
        hid = (1.0 - z) * n + z * hid

    # out_linear on cat([hid7, restrict, number]): split the weight rows
    # instead of materializing the concat (mathematically identical).
    restrict = sc_ref[0]
    number = sc_ref[1]
    y = (jnp.dot(hid, out_pk_ref[0:H, :], preferred_element_type=jnp.float32)
         + restrict * out_pk_ref[H:H + 1, :]
         + number * out_pk_ref[H + 1:H + 2, :]
         + out_pk_ref[H + 2:H + 3, :])
    y_ref[...] = y


# ---------------------------------------------------------------------------
# Parameters (deterministic, PyTorch-style uniform init; PyTorch layout)
# ---------------------------------------------------------------------------
def _linear(key, fan_in, fan_out):
    kw, kb = jax.random.split(key)
    bound = 1.0 / jnp.sqrt(float(fan_in))
    w = jax.random.uniform(kw, (fan_in, fan_out), jnp.float32, -bound, bound)
    b = jax.random.uniform(kb, (1, fan_out), jnp.float32, -bound, bound)
    return w, b


def make_params(key):
    H, O = HIDDEN_NUM, OUTPUT_NUM
    keys = jax.random.split(key, 10)
    fl1_w, fl1_b = _linear(keys[0], FEAT_DIM, 66)
    fl2_w, fl2_b = _linear(keys[1], 66, 66)
    fl3_w, fl3_b = _linear(keys[2], 66, H)
    emb_w, emb_b = _linear(keys[3], H0_DIM, H)
    out_w, out_b = _linear(keys[4], H + 2, O)

    bound = 1.0 / jnp.sqrt(float(H))
    gk = jax.random.split(keys[5], 4)
    gru_wih = jax.random.uniform(gk[0], (NUM_CELLS, INPUT_NUM, 3 * H), jnp.float32, -bound, bound)
    gru_whh = jax.random.uniform(gk[1], (NUM_CELLS, H, 3 * H), jnp.float32, -bound, bound)
    gru_bih = jax.random.uniform(gk[2], (NUM_CELLS, 3 * H), jnp.float32, -bound, bound)
    gru_bhh = jax.random.uniform(gk[3], (NUM_CELLS, 3 * H), jnp.float32, -bound, bound)

    return (fl1_w, fl1_b, fl2_w, fl2_b, fl3_w, fl3_b, emb_w, emb_b,
            gru_wih, gru_whh, gru_bih, gru_bhh, out_w, out_b)


def pack_params(params):
    """One-time offline fold/pack of the raw params into kernel operands.

    * The feature MLP has NO nonlinearities in the original PyTorch model, so
      folding fl1@fl2@fl3 (and the biases) plus the embedding weight is
      mathematically identical up to FP reassociation.
    * The first GRU cell's hidden-gate projection is linear in the prologue
      output, so W_pro @ W_hh0 (and its bias) is appended to the prologue
      weight: the 496x32 matvec becomes 496x128 (still one MXU output tile).
    * For cells 1..6 the r|z part of b_hh is pre-added into b_ih (b_comb) so
      the in-loop matmul result feeds the sigmoid with a single add.
    """
    (fl1_w, fl1_b, fl2_w, fl2_b, fl3_w, fl3_b, emb_w, emb_b,
     gru_wih, gru_whh, gru_bih, gru_bhh, out_w, out_b) = params
    H = HIDDEN_NUM

    w_mlp = fl1_w @ fl2_w @ fl3_w                               # (462, H)
    b_mlp = (fl1_b @ fl2_w + fl2_b) @ fl3_w + fl3_b             # (1, H)
    pro_w = jnp.concatenate([w_mlp, emb_w], axis=0)             # (496, H)
    pro_b = b_mlp + emb_b                                       # (1, H)

    # Fold cell-0's gh into the prologue: gh0 = [feat|h0] @ (W_pro @ W_hh0)
    #                                           + (b_pro @ W_hh0 + b_hh0)
    w_hh0 = gru_whh[0]                                          # (H, 3H)
    pro_w_ext = jnp.concatenate([pro_w, pro_w @ w_hh0], axis=1)             # (496, 4H)
    pro_b_ext = jnp.concatenate([pro_b, pro_b @ w_hh0 + gru_bhh[0:1]], axis=1)  # (1, 4H)

    # Combined input-gate bias: cells 1..6 get b_hh's r|z part pre-added
    # (cell 0's b_hh is already fully inside the prologue fold above).
    b_comb = gru_bih.at[1:, :2 * H].add(gru_bhh[1:, :2 * H])    # (7, 3H)

    gru_pk = jnp.stack([gru_wih[:, 0, :], b_comb, gru_bhh], axis=0)  # (3, 7, 3H)
    out_pk = jnp.concatenate([out_w, out_b], axis=0)            # (H+3, O)

    return (pro_w_ext, pro_b_ext, gru_pk, gru_whh, out_pk)


# ---------------------------------------------------------------------------
# Wrapper
# ---------------------------------------------------------------------------
def model_forward(xt, h0, feature_t, number, restrict, packed):
    pro_w, pro_b, gru_pk, gru_whh, out_pk = packed

    pro_in = jnp.concatenate(
        [feature_t.reshape(1, -1), h0.reshape(1, H0_DIM)], axis=1).astype(jnp.float32)
    xt_col = xt.reshape(NUM_CELLS, 1).astype(jnp.float32)
    scalars = jnp.stack(
        [restrict.reshape(()), number.reshape(())]).astype(jnp.float32)   # [restrict, number]

    vmem = pl.BlockSpec(memory_space=pltpu.MemorySpace.VMEM)
    smem = pl.BlockSpec(memory_space=pltpu.MemorySpace.SMEM)

    return pl.pallas_call(
        model_kernel,
        out_shape=jax.ShapeDtypeStruct((1, OUTPUT_NUM), jnp.float32),
        in_specs=[smem, vmem, vmem, vmem, vmem, vmem, vmem, vmem],
        out_specs=vmem,
    )(scalars, xt_col, pro_in, pro_w, pro_b, gru_pk, gru_whh, out_pk)


# Pure-JAX reference (unfused, same math as the PyTorch module).
def model_forward_ref(xt, h0, feature_t, number, restrict, params):
    (fl1_w, fl1_b, fl2_w, fl2_b, fl3_w, fl3_b, emb_w, emb_b,
     gru_wih, gru_whh, gru_bih, gru_bhh, out_w, out_b) = params
    H = HIDDEN_NUM
    feat = feature_t.reshape(1, -1)
    f = feat @ fl1_w + fl1_b
    f = f @ fl2_w + fl2_b
    f = f @ fl3_w + fl3_b
    hid = h0.reshape(1, H0_DIM) @ emb_w + emb_b + f
    xr = xt.reshape(NUM_CELLS, 1)
    for c in range(NUM_CELLS):
        x_c = xr[c].reshape(1, 1)
        gi = x_c @ gru_wih[c] + gru_bih[c:c + 1]
        gh = hid @ gru_whh[c] + gru_bhh[c:c + 1]
        r = jax.nn.sigmoid(gi[:, :H] + gh[:, :H])
        z = jax.nn.sigmoid(gi[:, H:2 * H] + gh[:, H:2 * H])
        n = jnp.tanh(gi[:, 2 * H:] + r * gh[:, 2 * H:])
        hid = (1.0 - z) * n + z * hid
    cat = jnp.concatenate([hid, restrict.reshape(1, 1), number.reshape(1, 1)], axis=1)
    return cat @ out_w + out_b


if __name__ == "__main__":
    key = jax.random.PRNGKey(0)
    k_par, k_xt, k_h0, k_ft, k_n, k_r = jax.random.split(key, 6)

    params = make_params(k_par)
    packed = jax.tree.map(jax.block_until_ready, pack_params(params))

    xt = jax.random.normal(k_xt, (NUM_CELLS,), jnp.float32)
    h0 = jax.random.normal(k_h0, (1, H0_DIM), jnp.float32)
    feature_t = jax.random.normal(k_ft, (1, FEAT_DIM), jnp.float32)
    number = jax.random.normal(k_n, (1,), jnp.float32)
    restrict = jax.random.normal(k_r, (1,), jnp.float32)

    y = model_forward(xt, h0, feature_t, number, restrict, packed)
    y = jax.block_until_ready(y)

    y_ref = model_forward_ref(xt, h0, feature_t, number, restrict, params)
    assert y.shape == (1, OUTPUT_NUM)
    assert jnp.allclose(y, y_ref, atol=1e-4, rtol=1e-4), (y, y_ref)

    print("KERNEL_OK")
</pallas_src>

<mosaic_0001>
module attributes {stable_mosaic.version = 11 : i64} {
  func.func @model_kernel(%arg0: memref<2xf32, #tpu.memory_space<smem>>, %arg1: memref<7x1xf32, #tpu.memory_space<vmem>>, %arg2: memref<1x496xf32, #tpu.memory_space<vmem>>, %arg3: memref<496x128xf32, #tpu.memory_space<vmem>>, %arg4: memref<1x128xf32, #tpu.memory_space<vmem>>, %arg5: memref<3x7x96xf32, #tpu.memory_space<vmem>>, %arg6: memref<7x32x96xf32, #tpu.memory_space<vmem>>, %arg7: memref<35x4xf32, #tpu.memory_space<vmem>>, %arg8: memref<1x4xf32, #tpu.memory_space<vmem>>) attributes {dimension_semantics = [], scalar_prefetch = 0 : i64, scratch_operands = 0 : i64, tpu.core_type = #tpu.core_type<tc>} {
    %c0 = arith.constant 0 : index
    %c0_0 = arith.constant 0 : index
    %0 = vector.load %arg2[%c0, %c0_0] : memref<1x496xf32, #tpu.memory_space<vmem>>, vector<1x496xf32>
    %c0_1 = arith.constant 0 : index
    %c0_2 = arith.constant 0 : index
    %1 = vector.load %arg3[%c0_1, %c0_2] : memref<496x128xf32, #tpu.memory_space<vmem>>, vector<496x128xf32>
    %cst = arith.constant dense<0.000000e+00> : vector<1x128xf32>
    %2 = tpu.matmul %0, %1, %cst {dimension_numbers = #tpu.dot_dimension_numbers<[1], [0], [0], [1], [0, 0, 1, 1], [], []>} : vector<1x496xf32>, vector<496x128xf32>, vector<1x128xf32> -> vector<1x128xf32>
    %c0_3 = arith.constant 0 : index
    %c0_4 = arith.constant 0 : index
    %3 = vector.load %arg4[%c0_3, %c0_4] : memref<1x128xf32, #tpu.memory_space<vmem>>, vector<1x128xf32>
    %4 = arith.addf %2, %3 : vector<1x128xf32>
    %5 = vector.extract_strided_slice %4 {offsets = [0, 0], sizes = [1, 32], strides = [1, 1]} : vector<1x128xf32> to vector<1x32xf32>
    %c0_5 = arith.constant 0 : index
    %c0_6 = arith.constant 0 : index
    %6 = vector.load %arg1[%c0_5, %c0_6] : memref<7x1xf32, #tpu.memory_space<vmem>>, vector<7x1xf32>
    %c0_7 = arith.constant 0 : index
    %c0_8 = arith.constant 0 : index
    %c0_9 = arith.constant 0 : index
    %7 = vector.load %arg5[%c0_7, %c0_8, %c0_9] : memref<3x7x96xf32, #tpu.memory_space<vmem>>, vector<1x7x96xf32>
    %8 = vector.shape_cast %7 : vector<1x7x96xf32> to vector<7x96xf32>
    %9 = vector.broadcast %6 : vector<7x1xf32> to vector<7x96xf32>
    %10 = arith.mulf %9, %8 : vector<7x96xf32>
    %c1 = arith.constant 1 : index
    %c0_10 = arith.constant 0 : index
    %c0_11 = arith.constant 0 : index
    %11 = vector.load %arg5[%c1, %c0_10, %c0_11] : memref<3x7x96xf32, #tpu.memory_space<vmem>>, vector<1x7x96xf32>
    %12 = vector.shape_cast %11 : vector<1x7x96xf32> to vector<7x96xf32>
    %13 = arith.addf %10, %12 : vector<7x96xf32>
    %c2 = arith.constant 2 : index
    %c0_12 = arith.constant 0 : index
    %c0_13 = arith.constant 0 : index
    %14 = vector.load %arg5[%c2, %c0_12, %c0_13] : memref<3x7x96xf32, #tpu.memory_space<vmem>>, vector<1x7x96xf32>
    %15 = vector.shape_cast %14 : vector<1x7x96xf32> to vector<7x96xf32>
    %16 = vector.extract_strided_slice %13 {offsets = [0, 0], sizes = [1, 96], strides = [1, 1]} : vector<7x96xf32> to vector<1x96xf32>
    %17 = vector.extract_strided_slice %4 {offsets = [0, 32], sizes = [1, 64], strides = [1, 1]} : vector<1x128xf32> to vector<1x64xf32>
    %18 = vector.extract_strided_slice %4 {offsets = [0, 96], sizes = [1, 32], strides = [1, 1]} : vector<1x128xf32> to vector<1x32xf32>
    %19 = vector.extract_strided_slice %16 {offsets = [0, 0], sizes = [1, 64], strides = [1, 1]} : vector<1x96xf32> to vector<1x64xf32>
    %20 = arith.addf %19, %17 : vector<1x64xf32>
    %21 = arith.negf %20 : vector<1x64xf32>
    %22 = math.exp %21 : vector<1x64xf32>
    %cst_14 = arith.constant 1.000000e+00 : f32
    %23 = vector.broadcast %cst_14 : f32 to vector<1x64xf32>
    %24 = arith.addf %23, %22 : vector<1x64xf32>
    %25 = arith.divf %23, %24 : vector<1x64xf32>
    %26 = vector.extract_strided_slice %25 {offsets = [0, 0], sizes = [1, 32], strides = [1, 1]} : vector<1x64xf32> to vector<1x32xf32>
    %27 = vector.extract_strided_slice %25 {offsets = [0, 32], sizes = [1, 32], strides = [1, 1]} : vector<1x64xf32> to vector<1x32xf32>
    %28 = vector.extract_strided_slice %16 {offsets = [0, 64], sizes = [1, 32], strides = [1, 1]} : vector<1x96xf32> to vector<1x32xf32>
    %29 = arith.mulf %26, %18 : vector<1x32xf32>
    %30 = arith.addf %28, %29 : vector<1x32xf32>
    %31 = math.tanh %30 : vector<1x32xf32>
    %cst_15 = arith.constant 1.000000e+00 : f32
    %32 = vector.broadcast %cst_15 : f32 to vector<1x32xf32>
    %33 = arith.subf %32, %27 : vector<1x32xf32>
    %34 = arith.mulf %33, %31 : vector<1x32xf32>
    %35 = arith.mulf %27, %5 : vector<1x32xf32>
    %36 = arith.addf %34, %35 : vector<1x32xf32>
    %37 = vector.extract_strided_slice %13 {offsets = [1, 0], sizes = [1, 96], strides = [1, 1]} : vector<7x96xf32> to vector<1x96xf32>
    %c1_16 = arith.constant 1 : index
    %c0_17 = arith.constant 0 : index
    %c0_18 = arith.constant 0 : index
    %38 = vector.load %arg6[%c1_16, %c0_17, %c0_18] : memref<7x32x96xf32, #tpu.memory_space<vmem>>, vector<1x32x96xf32>
    %39 = vector.shape_cast %38 : vector<1x32x96xf32> to vector<32x96xf32>
    %cst_19 = arith.constant dense<0.000000e+00> : vector<1x96xf32>
    %40 = tpu.matmul %36, %39, %cst_19 {dimension_numbers = #tpu.dot_dimension_numbers<[1], [0], [0], [1], [0, 0, 1, 1], [], []>} : vector<1x32xf32>, vector<32x96xf32>, vector<1x96xf32> -> vector<1x96xf32>
    %41 = vector.extract_strided_slice %40 {offsets = [0, 0], sizes = [1, 64], strides = [1, 1]} : vector<1x96xf32> to vector<1x64xf32>
    %42 = vector.extract_strided_slice %40 {offsets = [0, 64], sizes = [1, 32], strides = [1, 1]} : vector<1x96xf32> to vector<1x32xf32>
    %43 = vector.extract_strided_slice %15 {offsets = [1, 64], sizes = [1, 32], strides = [1, 1]} : vector<7x96xf32> to vector<1x32xf32>
    %44 = arith.addf %42, %43 : vector<1x32xf32>
    %45 = vector.extract_strided_slice %37 {offsets = [0, 0], sizes = [1, 64], strides = [1, 1]} : vector<1x96xf32> to vector<1x64xf32>
    %46 = arith.addf %45, %41 : vector<1x64xf32>
    %47 = arith.negf %46 : vector<1x64xf32>
    %48 = math.exp %47 : vector<1x64xf32>
    %cst_20 = arith.constant 1.000000e+00 : f32
    %49 = vector.broadcast %cst_20 : f32 to vector<1x64xf32>
    %50 = arith.addf %49, %48 : vector<1x64xf32>
    %51 = arith.divf %49, %50 : vector<1x64xf32>
    %52 = vector.extract_strided_slice %51 {offsets = [0, 0], sizes = [1, 32], strides = [1, 1]} : vector<1x64xf32> to vector<1x32xf32>
    %53 = vector.extract_strided_slice %51 {offsets = [0, 32], sizes = [1, 32], strides = [1, 1]} : vector<1x64xf32> to vector<1x32xf32>
    %54 = vector.extract_strided_slice %37 {offsets = [0, 64], sizes = [1, 32], strides = [1, 1]} : vector<1x96xf32> to vector<1x32xf32>
    %55 = arith.mulf %52, %44 : vector<1x32xf32>
    %56 = arith.addf %54, %55 : vector<1x32xf32>
    %57 = math.tanh %56 : vector<1x32xf32>
    %cst_21 = arith.constant 1.000000e+00 : f32
    %58 = vector.broadcast %cst_21 : f32 to vector<1x32xf32>
    %59 = arith.subf %58, %53 : vector<1x32xf32>
    %60 = arith.mulf %59, %57 : vector<1x32xf32>
    %61 = arith.mulf %53, %36 : vector<1x32xf32>
    %62 = arith.addf %60, %61 : vector<1x32xf32>
    %63 = vector.extract_strided_slice %13 {offsets = [2, 0], sizes = [1, 96], strides = [1, 1]} : vector<7x96xf32> to vector<1x96xf32>
    %c2_22 = arith.constant 2 : index
    %c0_23 = arith.constant 0 : index
    %c0_24 = arith.constant 0 : index
    %64 = vector.load %arg6[%c2_22, %c0_23, %c0_24] : memref<7x32x96xf32, #tpu.memory_space<vmem>>, vector<1x32x96xf32>
    %65 = vector.shape_cast %64 : vector<1x32x96xf32> to vector<32x96xf32>
    %cst_25 = arith.constant dense<0.000000e+00> : vector<1x96xf32>
    %66 = tpu.matmul %62, %65, %cst_25 {dimension_numbers = #tpu.dot_dimension_numbers<[1], [0], [0], [1], [0, 0, 1, 1], [], []>} : vector<1x32xf32>, vector<32x96xf32>, vector<1x96xf32> -> vector<1x96xf32>
    %67 = vector.extract_strided_slice %66 {offsets = [0, 0], sizes = [1, 64], strides = [1, 1]} : vector<1x96xf32> to vector<1x64xf32>
    %68 = vector.extract_strided_slice %66 {offsets = [0, 64], sizes = [1, 32], strides = [1, 1]} : vector<1x96xf32> to vector<1x32xf32>
    %69 = vector.extract_strided_slice %15 {offsets = [2, 64], sizes = [1, 32], strides = [1, 1]} : vector<7x96xf32> to vector<1x32xf32>
    %70 = arith.addf %68, %69 : vector<1x32xf32>
    %71 = vector.extract_strided_slice %63 {offsets = [0, 0], sizes = [1, 64], strides = [1, 1]} : vector<1x96xf32> to vector<1x64xf32>
    %72 = arith.addf %71, %67 : vector<1x64xf32>
    %73 = arith.negf %72 : vector<1x64xf32>
    %74 = math.exp %73 : vector<1x64xf32>
    %cst_26 = arith.constant 1.000000e+00 : f32
    %75 = vector.broadcast %cst_26 : f32 to vector<1x64xf32>
    %76 = arith.addf %75, %74 : vector<1x64xf32>
    %77 = arith.divf %75, %76 : vector<1x64xf32>
    %78 = vector.extract_strided_slice %77 {offsets = [0, 0], sizes = [1, 32], strides = [1, 1]} : vector<1x64xf32> to vector<1x32xf32>
    %79 = vector.extract_strided_slice %77 {offsets = [0, 32], sizes = [1, 32], strides = [1, 1]} : vector<1x64xf32> to vector<1x32xf32>
    %80 = vector.extract_strided_slice %63 {offsets = [0, 64], sizes = [1, 32], strides = [1, 1]} : vector<1x96xf32> to vector<1x32xf32>
    %81 = arith.mulf %78, %70 : vector<1x32xf32>
    %82 = arith.addf %80, %81 : vector<1x32xf32>
    %83 = math.tanh %82 : vector<1x32xf32>
    %cst_27 = arith.constant 1.000000e+00 : f32
    %84 = vector.broadcast %cst_27 : f32 to vector<1x32xf32>
    %85 = arith.subf %84, %79 : vector<1x32xf32>
    %86 = arith.mulf %85, %83 : vector<1x32xf32>
    %87 = arith.mulf %79, %62 : vector<1x32xf32>
    %88 = arith.addf %86, %87 : vector<1x32xf32>
    %89 = vector.extract_strided_slice %13 {offsets = [3, 0], sizes = [1, 96], strides = [1, 1]} : vector<7x96xf32> to vector<1x96xf32>
    %c3 = arith.constant 3 : index
    %c0_28 = arith.constant 0 : index
    %c0_29 = arith.constant 0 : index
    %90 = vector.load %arg6[%c3, %c0_28, %c0_29] : memref<7x32x96xf32, #tpu.memory_space<vmem>>, vector<1x32x96xf32>
    %91 = vector.shape_cast %90 : vector<1x32x96xf32> to vector<32x96xf32>
    %cst_30 = arith.constant dense<0.000000e+00> : vector<1x96xf32>
    %92 = tpu.matmul %88, %91, %cst_30 {dimension_numbers = #tpu.dot_dimension_numbers<[1], [0], [0], [1], [0, 0, 1, 1], [], []>} : vector<1x32xf32>, vector<32x96xf32>, vector<1x96xf32> -> vector<1x96xf32>
    %93 = vector.extract_strided_slice %92 {offsets = [0, 0], sizes = [1, 64], strides = [1, 1]} : vector<1x96xf32> to vector<1x64xf32>
    %94 = vector.extract_strided_slice %92 {offsets = [0, 64], sizes = [1, 32], strides = [1, 1]} : vector<1x96xf32> to vector<1x32xf32>
    %95 = vector.extract_strided_slice %15 {offsets = [3, 64], sizes = [1, 32], strides = [1, 1]} : vector<7x96xf32> to vector<1x32xf32>
    %96 = arith.addf %94, %95 : vector<1x32xf32>
    %97 = vector.extract_strided_slice %89 {offsets = [0, 0], sizes = [1, 64], strides = [1, 1]} : vector<1x96xf32> to vector<1x64xf32>
    %98 = arith.addf %97, %93 : vector<1x64xf32>
    %99 = arith.negf %98 : vector<1x64xf32>
    %100 = math.exp %99 : vector<1x64xf32>
    %cst_31 = arith.constant 1.000000e+00 : f32
    %101 = vector.broadcast %cst_31 : f32 to vector<1x64xf32>
    %102 = arith.addf %101, %100 : vector<1x64xf32>
    %103 = arith.divf %101, %102 : vector<1x64xf32>
    %104 = vector.extract_strided_slice %103 {offsets = [0, 0], sizes = [1, 32], strides = [1, 1]} : vector<1x64xf32> to vector<1x32xf32>
    %105 = vector.extract_strided_slice %103 {offsets = [0, 32], sizes = [1, 32], strides = [1, 1]} : vector<1x64xf32> to vector<1x32xf32>
    %106 = vector.extract_strided_slice %89 {offsets = [0, 64], sizes = [1, 32], strides = [1, 1]} : vector<1x96xf32> to vector<1x32xf32>
    %107 = arith.mulf %104, %96 : vector<1x32xf32>
    %108 = arith.addf %106, %107 : vector<1x32xf32>
    %109 = math.tanh %108 : vector<1x32xf32>
    %cst_32 = arith.constant 1.000000e+00 : f32
    %110 = vector.broadcast %cst_32 : f32 to vector<1x32xf32>
    %111 = arith.subf %110, %105 : vector<1x32xf32>
    %112 = arith.mulf %111, %109 : vector<1x32xf32>
    %113 = arith.mulf %105, %88 : vector<1x32xf32>
    %114 = arith.addf %112, %113 : vector<1x32xf32>
    %115 = vector.extract_strided_slice %13 {offsets = [4, 0], sizes = [1, 96], strides = [1, 1]} : vector<7x96xf32> to vector<1x96xf32>
    %c4 = arith.constant 4 : index
    %c0_33 = arith.constant 0 : index
    %c0_34 = arith.constant 0 : index
    %116 = vector.load %arg6[%c4, %c0_33, %c0_34] : memref<7x32x96xf32, #tpu.memory_space<vmem>>, vector<1x32x96xf32>
    %117 = vector.shape_cast %116 : vector<1x32x96xf32> to vector<32x96xf32>
    %cst_35 = arith.constant dense<0.000000e+00> : vector<1x96xf32>
    %118 = tpu.matmul %114, %117, %cst_35 {dimension_numbers = #tpu.dot_dimension_numbers<[1], [0], [0], [1], [0, 0, 1, 1], [], []>} : vector<1x32xf32>, vector<32x96xf32>, vector<1x96xf32> -> vector<1x96xf32>
    %119 = vector.extract_strided_slice %118 {offsets = [0, 0], sizes = [1, 64], strides = [1, 1]} : vector<1x96xf32> to vector<1x64xf32>
    %120 = vector.extract_strided_slice %118 {offsets = [0, 64], sizes = [1, 32], strides = [1, 1]} : vector<1x96xf32> to vector<1x32xf32>
    %121 = vector.extract_strided_slice %15 {offsets = [4, 64], sizes = [1, 32], strides = [1, 1]} : vector<7x96xf32> to vector<1x32xf32>
    %122 = arith.addf %120, %121 : vector<1x32xf32>
    %123 = vector.extract_strided_slice %115 {offsets = [0, 0], sizes = [1, 64], strides = [1, 1]} : vector<1x96xf32> to vector<1x64xf32>
    %124 = arith.addf %123, %119 : vector<1x64xf32>
    %125 = arith.negf %124 : vector<1x64xf32>
    %126 = math.exp %125 : vector<1x64xf32>
    %cst_36 = arith.constant 1.000000e+00 : f32
    %127 = vector.broadcast %cst_36 : f32 to vector<1x64xf32>
    %128 = arith.addf %127, %126 : vector<1x64xf32>
    %129 = arith.divf %127, %128 : vector<1x64xf32>
    %130 = vector.extract_strided_slice %129 {offsets = [0, 0], sizes = [1, 32], strides = [1, 1]} : vector<1x64xf32> to vector<1x32xf32>
    %131 = vector.extract_strided_slice %129 {offsets = [0, 32], sizes = [1, 32], strides = [1, 1]} : vector<1x64xf32> to vector<1x32xf32>
    %132 = vector.extract_strided_slice %115 {offsets = [0, 64], sizes = [1, 32], strides = [1, 1]} : vector<1x96xf32> to vector<1x32xf32>
    %133 = arith.mulf %130, %122 : vector<1x32xf32>
    %134 = arith.addf %132, %133 : vector<1x32xf32>
    %135 = math.tanh %134 : vector<1x32xf32>
    %cst_37 = arith.constant 1.000000e+00 : f32
    %136 = vector.broadcast %cst_37 : f32 to vector<1x32xf32>
    %137 = arith.subf %136, %131 : vector<1x32xf32>
    %138 = arith.mulf %137, %135 : vector<1x32xf32>
    %139 = arith.mulf %131, %114 : vector<1x32xf32>
    %140 = arith.addf %138, %139 : vector<1x32xf32>
    %141 = vector.extract_strided_slice %13 {offsets = [5, 0], sizes = [1, 96], strides = [1, 1]} : vector<7x96xf32> to vector<1x96xf32>
    %c5 = arith.constant 5 : index
    %c0_38 = arith.constant 0 : index
    %c0_39 = arith.constant 0 : index
    %142 = vector.load %arg6[%c5, %c0_38, %c0_39] : memref<7x32x96xf32, #tpu.memory_space<vmem>>, vector<1x32x96xf32>
    %143 = vector.shape_cast %142 : vector<1x32x96xf32> to vector<32x96xf32>
    %cst_40 = arith.constant dense<0.000000e+00> : vector<1x96xf32>
    %144 = tpu.matmul %140, %143, %cst_40 {dimension_numbers = #tpu.dot_dimension_numbers<[1], [0], [0], [1], [0, 0, 1, 1], [], []>} : vector<1x32xf32>, vector<32x96xf32>, vector<1x96xf32> -> vector<1x96xf32>
    %145 = vector.extract_strided_slice %144 {offsets = [0, 0], sizes = [1, 64], strides = [1, 1]} : vector<1x96xf32> to vector<1x64xf32>
    %146 = vector.extract_strided_slice %144 {offsets = [0, 64], sizes = [1, 32], strides = [1, 1]} : vector<1x96xf32> to vector<1x32xf32>
    %147 = vector.extract_strided_slice %15 {offsets = [5, 64], sizes = [1, 32], strides = [1, 1]} : vector<7x96xf32> to vector<1x32xf32>
    %148 = arith.addf %146, %147 : vector<1x32xf32>
    %149 = vector.extract_strided_slice %141 {offsets = [0, 0], sizes = [1, 64], strides = [1, 1]} : vector<1x96xf32> to vector<1x64xf32>
    %150 = arith.addf %149, %145 : vector<1x64xf32>
    %151 = arith.negf %150 : vector<1x64xf32>
    %152 = math.exp %151 : vector<1x64xf32>
    %cst_41 = arith.constant 1.000000e+00 : f32
    %153 = vector.broadcast %cst_41 : f32 to vector<1x64xf32>
    %154 = arith.addf %153, %152 : vector<1x64xf32>
    %155 = arith.divf %153, %154 : vector<1x64xf32>
    %156 = vector.extract_strided_slice %155 {offsets = [0, 0], sizes = [1, 32], strides = [1, 1]} : vector<1x64xf32> to vector<1x32xf32>
    %157 = vector.extract_strided_slice %155 {offsets = [0, 32], sizes = [1, 32], strides = [1, 1]} : vector<1x64xf32> to vector<1x32xf32>
    %158 = vector.extract_strided_slice %141 {offsets = [0, 64], sizes = [1, 32], strides = [1, 1]} : vector<1x96xf32> to vector<1x32xf32>
    %159 = arith.mulf %156, %148 : vector<1x32xf32>
    %160 = arith.addf %158, %159 : vector<1x32xf32>
    %161 = math.tanh %160 : vector<1x32xf32>
    %cst_42 = arith.constant 1.000000e+00 : f32
    %162 = vector.broadcast %cst_42 : f32 to vector<1x32xf32>
    %163 = arith.subf %162, %157 : vector<1x32xf32>
    %164 = arith.mulf %163, %161 : vector<1x32xf32>
    %165 = arith.mulf %157, %140 : vector<1x32xf32>
    %166 = arith.addf %164, %165 : vector<1x32xf32>
    %167 = vector.extract_strided_slice %13 {offsets = [6, 0], sizes = [1, 96], strides = [1, 1]} : vector<7x96xf32> to vector<1x96xf32>
    %c6 = arith.constant 6 : index
    %c0_43 = arith.constant 0 : index
    %c0_44 = arith.constant 0 : index
    %168 = vector.load %arg6[%c6, %c0_43, %c0_44] : memref<7x32x96xf32, #tpu.memory_space<vmem>>, vector<1x32x96xf32>
    %169 = vector.shape_cast %168 : vector<1x32x96xf32> to vector<32x96xf32>
    %cst_45 = arith.constant dense<0.000000e+00> : vector<1x96xf32>
    %170 = tpu.matmul %166, %169, %cst_45 {dimension_numbers = #tpu.dot_dimension_numbers<[1], [0], [0], [1], [0, 0, 1, 1], [], []>} : vector<1x32xf32>, vector<32x96xf32>, vector<1x96xf32> -> vector<1x96xf32>
    %171 = vector.extract_strided_slice %170 {offsets = [0, 0], sizes = [1, 64], strides = [1, 1]} : vector<1x96xf32> to vector<1x64xf32>
    %172 = vector.extract_strided_slice %170 {offsets = [0, 64], sizes = [1, 32], strides = [1, 1]} : vector<1x96xf32> to vector<1x32xf32>
    %173 = vector.extract_strided_slice %15 {offsets = [6, 64], sizes = [1, 32], strides = [1, 1]} : vector<7x96xf32> to vector<1x32xf32>
    %174 = arith.addf %172, %173 : vector<1x32xf32>
    %175 = vector.extract_strided_slice %167 {offsets = [0, 0], sizes = [1, 64], strides = [1, 1]} : vector<1x96xf32> to vector<1x64xf32>
    %176 = arith.addf %175, %171 : vector<1x64xf32>
    %177 = arith.negf %176 : vector<1x64xf32>
    %178 = math.exp %177 : vector<1x64xf32>
    %cst_46 = arith.constant 1.000000e+00 : f32
    %179 = vector.broadcast %cst_46 : f32 to vector<1x64xf32>
    %180 = arith.addf %179, %178 : vector<1x64xf32>
    %181 = arith.divf %179, %180 : vector<1x64xf32>
    %182 = vector.extract_strided_slice %181 {offsets = [0, 0], sizes = [1, 32], strides = [1, 1]} : vector<1x64xf32> to vector<1x32xf32>
    %183 = vector.extract_strided_slice %181 {offsets = [0, 32], sizes = [1, 32], strides = [1, 1]} : vector<1x64xf32> to vector<1x32xf32>
    %184 = vector.extract_strided_slice %167 {offsets = [0, 64], sizes = [1, 32], strides = [1, 1]} : vector<1x96xf32> to vector<1x32xf32>
    %185 = arith.mulf %182, %174 : vector<1x32xf32>
    %186 = arith.addf %184, %185 : vector<1x32xf32>
    %187 = math.tanh %186 : vector<1x32xf32>
    %cst_47 = arith.constant 1.000000e+00 : f32
    %188 = vector.broadcast %cst_47 : f32 to vector<1x32xf32>
    %189 = arith.subf %188, %183 : vector<1x32xf32>
    %190 = arith.mulf %189, %187 : vector<1x32xf32>
    %191 = arith.mulf %183, %166 : vector<1x32xf32>
    %192 = arith.addf %190, %191 : vector<1x32xf32>
    %c0_48 = arith.constant 0 : index
    %193 = memref.load %arg0[%c0_48] : memref<2xf32, #tpu.memory_space<smem>>
    %c1_49 = arith.constant 1 : index
    %194 = memref.load %arg0[%c1_49] : memref<2xf32, #tpu.memory_space<smem>>
    %c0_50 = arith.constant 0 : index
    %c0_51 = arith.constant 0 : index
    %195 = vector.load %arg7[%c0_50, %c0_51] : memref<35x4xf32, #tpu.memory_space<vmem>>, vector<32x4xf32>
    %cst_52 = arith.constant dense<0.000000e+00> : vector<1x4xf32>
    %196 = tpu.matmul %192, %195, %cst_52 {dimension_numbers = #tpu.dot_dimension_numbers<[1], [0], [0], [1], [0, 0, 1, 1], [], []>} : vector<1x32xf32>, vector<32x4xf32>, vector<1x4xf32> -> vector<1x4xf32>
    %c32 = arith.constant 32 : index
    %c0_53 = arith.constant 0 : index
    %197 = vector.load %arg7[%c32, %c0_53] : memref<35x4xf32, #tpu.memory_space<vmem>>, vector<1x4xf32>
    %198 = vector.broadcast %193 : f32 to vector<1x4xf32>
    %199 = arith.mulf %198, %197 : vector<1x4xf32>
    %200 = arith.addf %196, %199 : vector<1x4xf32>
    %c33 = arith.constant 33 : index
    %c0_54 = arith.constant 0 : index
    %201 = vector.load %arg7[%c33, %c0_54] : memref<35x4xf32, #tpu.memory_space<vmem>>, vector<1x4xf32>
    %202 = vector.broadcast %194 : f32 to vector<1x4xf32>
    %203 = arith.mulf %202, %201 : vector<1x4xf32>
    %204 = arith.addf %200, %203 : vector<1x4xf32>
    %c34 = arith.constant 34 : index
    %c0_55 = arith.constant 0 : index
    %205 = vector.load %arg7[%c34, %c0_55] : memref<35x4xf32, #tpu.memory_space<vmem>>, vector<1x4xf32>
    %206 = arith.addf %204, %205 : vector<1x4xf32>
    %c0_56 = arith.constant 0 : index
    %c0_57 = arith.constant 0 : index
    %207 = vector.load %arg8[%c0_56, %c0_57] : memref<1x4xf32, #tpu.memory_space<vmem>>, vector<1x4xf32>
    tpu.vector_store %arg8[%c0_56, %c0_57], %206 {strides = array<i32>} : memref<1x4xf32, #tpu.memory_space<vmem>>, vector<1x4xf32>,
    return
  }
}

</mosaic_0001>

<llo_original>
// kernel: tpu_custom_call.1
$region0: #{tpu_custom_call.1}
  #allocation0 [shape = 'u32[]', space=smem, size = 0x4, offset = 0x4, fixed_abs, tag = 'smem constant byte address 0x4 - core index']
  #allocation1 [shape = 'u32[144,128]{1,0:T(1,128)}', space=vmem, size = 0x12000, scoped, tag = 'internal scratch']
  %s0 = inlined_call_operand.vmem [shape: f32[2], index: 0, kind: input, shape index: {}]
  %s1 = inlined_call_operand.vmem [shape: f32[7,1], index: 1, kind: input, shape index: {}]
  %s2 = inlined_call_operand.vmem [shape: f32[1,496], index: 2, kind: input, shape index: {}]
  %s3 = inlined_call_operand.hbm [shape: f32[496,128], index: 3, kind: input, shape index: {}]
  %s4 = inlined_call_operand.vmem [shape: f32[1,128], index: 4, kind: input, shape index: {}]
  %s5 = inlined_call_operand.vmem [shape: f32[3,7,96], index: 5, kind: input, shape index: {}]
  %s6 = inlined_call_operand.hbm [shape: f32[7,32,96], index: 6, kind: input, shape index: {}]
  %s7 = inlined_call_operand.vmem [shape: f32[35,4], index: 7, kind: input, shape index: {}]
  %s8 = inlined_call_operand.hbm [shape: f32[1,4], index: 8, kind: output, shape index: {}]
  %s9 = sld [smem:[#allocation0]]
  $region54: #{tpu_custom_call.1} parent=0
    _
  %s11 = ssub.s32 1, %s9
  %s12 = scalar_select 0, %s11, %s9
  $region1: #{tpu_custom_call.1} parent=0
    #allocation2 [shape = 'u8[512]{0}', space=smem, size = 0x200, scoped, tag = 'input window, operand 0, single buffered']
    #allocation3 [shape = 's32[1]{0}', space=sflag, size = 0x4, scoped, tag = 'scoped memory for tpu_custom_call.1']
    #allocation4 [shape = 's32[1]{0}', space=sflag, size = 0x4, scoped, tag = 'scoped memory for tpu_custom_call.1']
    #allocation5 [shape = 's32[1]{0}', space=sflag, size = 0x4, scoped, tag = 'scoped memory for tpu_custom_call.1']
    #allocation6 [shape = 'u8[253952]{0}', space=vmem, size = 0x3e000, scoped, tag = 'input window, operand 3, single buffered']
    #allocation7 [shape = 'u8[114688]{0}', space=vmem, size = 0x1c000, scoped, tag = 'input window, operand 6, single buffered']
    #allocation8 [shape = 's32[1]{0}', space=sflag, size = 0x4, scoped, tag = 'scoped memory for tpu_custom_call.1']
    #allocation9 [shape = 'u8[512]{0}', space=vmem, size = 0x400, scoped, tag = 'output window, operand 0, single buffered']
    %13 = vsyncpa [#allocation5], 0
    %14 = vsyncpa [#allocation3], 0
    %15 = vsyncpa [#allocation8], 0
    %16 = vsyncpa [#allocation4], 0
    // Predicated region
    $region2: #{tpu_custom_call.1} parent=1 // pred_check
      _
    $region3: #{tpu_custom_call.1} parent=1 // pred_check_branch
      %18 = sbr.rel (0) target = $region5
    $region4: #{tpu_custom_call.1} parent=1 // pred_region
      %s20 = ssub.s32 16, 16
      %21 = vsyncadd [#allocation5], %s20
      %s23 = sshll.u32 %s0, 4
      %s24 = int_to_ptr.vmem [resolvable:$true] %s23
      %26 = dma.vmem_to_smem %s24, 16, [#allocation2], [#allocation5]
    $region5: #{tpu_custom_call.1} parent=1 // pred_fallthru
      _
    // Predicated region
    $region6: #{tpu_custom_call.1} parent=1 // pred_check
      _
    $region7: #{tpu_custom_call.1} parent=1 // pred_check_branch
      %28 = sbr.rel (0) target = $region9
    $region8: #{tpu_custom_call.1} parent=1 // pred_region
      _
    $region9: #{tpu_custom_call.1} parent=1 // pred_fallthru
      _
    // Predicated region
    $region10: #{tpu_custom_call.1} parent=1 // pred_check
      _
    $region11: #{tpu_custom_call.1} parent=1 // pred_check_branch
      %30 = sbr.rel (0) target = $region13
    $region12: #{tpu_custom_call.1} parent=1 // pred_region
      _
    $region13: #{tpu_custom_call.1} parent=1 // pred_fallthru
      _
    // Predicated region
    $region14: #{tpu_custom_call.1} parent=1 // pred_check
      _
    $region15: #{tpu_custom_call.1} parent=1 // pred_check_branch
      %32 = sbr.rel (0) target = $region17
    $region16: #{tpu_custom_call.1} parent=1 // pred_region
      %s34 = ssub.s32 7936, 7936
      %35 = vsyncadd [#allocation3], %s34
      %s36 = sshll.u32 [#allocation6], 4
      %s37 = int_to_ptr.vmem [resolvable:$true] %s36
      %42 = dma.hbm_to_vmem [thread:$0]  %s3, 7936, %s37, [#allocation3], 128, 128, 8
    $region17: #{tpu_custom_call.1} parent=1 // pred_fallthru
      _
    // Predicated region
    $region18: #{tpu_custom_call.1} parent=1 // pred_check
      _
    $region19: #{tpu_custom_call.1} parent=1 // pred_check_branch
      %44 = sbr.rel (0) target = $region21
    $region20: #{tpu_custom_call.1} parent=1 // pred_region
      _
    $region21: #{tpu_custom_call.1} parent=1 // pred_fallthru
      _
    // Predicated region
    $region22: #{tpu_custom_call.1} parent=1 // pred_check
      _
    $region23: #{tpu_custom_call.1} parent=1 // pred_check_branch
      %46 = sbr.rel (0) target = $region25
    $region24: #{tpu_custom_call.1} parent=1 // pred_region
      _
    $region25: #{tpu_custom_call.1} parent=1 // pred_fallthru
      _
    // Predicated region
    $region26: #{tpu_custom_call.1} parent=1 // pred_check
      _
    $region27: #{tpu_custom_call.1} parent=1 // pred_check_branch
      %48 = sbr.rel (0) target = $region29
    $region28: #{tpu_custom_call.1} parent=1 // pred_region
      %s50 = ssub.s32 3584, 3584
      %51 = vsyncadd [#allocation8], %s50
      %s52 = sshll.u32 [#allocation7], 4
      %s53 = int_to_ptr.vmem [resolvable:$true] %s52
      %58 = dma.hbm_to_vmem [thread:$0]  %s6, 3584, %s53, [#allocation8], 128, 128, 8
    $region29: #{tpu_custom_call.1} parent=1 // pred_fallthru
      _
    // Predicated region
    $region30: #{tpu_custom_call.1} parent=1 // pred_check
      _
    $region31: #{tpu_custom_call.1} parent=1 // pred_check_branch
      %60 = sbr.rel (0) target = $region33
    $region32: #{tpu_custom_call.1} parent=1 // pred_region
      _
    $region33: #{tpu_custom_call.1} parent=1 // pred_fallthru
      _
    // Predicated region
    $region34: #{tpu_custom_call.1} parent=1 // pred_check
      _
    $region35: #{tpu_custom_call.1} parent=1 // pred_check_branch
      %62 = sbr.rel (0) target = $region37
    $region36: #{tpu_custom_call.1} parent=1 // pred_region
      %63 = dma.done [#allocation5], 16
    $region37: #{tpu_custom_call.1} parent=1 // pred_fallthru
      _
    // Predicated region
    $region38: #{tpu_custom_call.1} parent=1 // pred_check
      _
    $region39: #{tpu_custom_call.1} parent=1 // pred_check_branch
      %65 = sbr.rel (0) target = $region41
    $region40: #{tpu_custom_call.1} parent=1 // pred_region
      %66 = dma.done [#allocation3], 7936
    $region41: #{tpu_custom_call.1} parent=1 // pred_fallthru
      _
    // Predicated region
    $region42: #{tpu_custom_call.1} parent=1 // pred_check
      _
    $region43: #{tpu_custom_call.1} parent=1 // pred_check_branch
      %68 = sbr.rel (0) target = $region45
    $region44: #{tpu_custom_call.1} parent=1 // pred_region
      %69 = dma.done [#allocation8], 3584
    $region45: #{tpu_custom_call.1} parent=1 // pred_fallthru
      _
    %70 = sfence
    %v71 = vld [vmem:[%s2] sm:$0xf]
    %v72 = vld [vmem:[#allocation6] sm:$0xff]
    %v73 = vld [vmem:[#allocation6 + $0x8] sm:$0xff]
    %v74 = vld [vmem:[#allocation6 + $0x10] sm:$0xff]
    %v75 = vld [vmem:[#allocation6 + $0x18] sm:$0xff]
    %v76 = vld [vmem:[#allocation6 + $0x20] sm:$0xff]
    %v77 = vld [vmem:[#allocation6 + $0x28] sm:$0xff]
    %v78 = vld [vmem:[#allocation6 + $0x30] sm:$0xff]
    %v79 = vld [vmem:[#allocation6 + $0x38] sm:$0xff]
    %v80 = vld [vmem:[#allocation6 + $0x40] sm:$0xff]
    %v81 = vld [vmem:[#allocation6 + $0x48] sm:$0xff]
    %v82 = vld [vmem:[#allocation6 + $0x50] sm:$0xff]
    %v83 = vld [vmem:[#allocation6 + $0x58] sm:$0xff]
    %v84 = vld [vmem:[#allocation6 + $0x60] sm:$0xff]
    %v85 = vld [vmem:[#allocation6 + $0x68] sm:$0xff]
    %v86 = vld [vmem:[#allocation6 + $0x70] sm:$0xff]
    %v87 = vld [vmem:[#allocation6 + $0x78] sm:$0xff]
    %v88 = vld [vmem:[#allocation6 + $0x80] sm:$0xff]
    %v89 = vld [vmem:[#allocation6 + $0x88] sm:$0xff]
    %v90 = vld [vmem:[#allocation6 + $0x90] sm:$0xff]
    %v91 = vld [vmem:[#allocation6 + $0x98] sm:$0xff]
    %v92 = vld [vmem:[#allocation6 + $0xa0] sm:$0xff]
    %v93 = vld [vmem:[#allocation6 + $0xa8] sm:$0xff]
    %v94 = vld [vmem:[#allocation6 + $0xb0] sm:$0xff]
    %v95 = vld [vmem:[#allocation6 + $0xb8] sm:$0xff]
    %v96 = vld [vmem:[#allocation6 + $0xc0] sm:$0xff]
    %v97 = vld [vmem:[#allocation6 + $0xc8] sm:$0xff]
    %v98 = vld [vmem:[#allocation6 + $0xd0] sm:$0xff]
    %v99 = vld [vmem:[#allocation6 + $0xd8] sm:$0xff]
    %v100 = vld [vmem:[#allocation6 + $0xe0] sm:$0xff]
    %v101 = vld [vmem:[#allocation6 + $0xe8] sm:$0xff]
    %v102 = vld [vmem:[#allocation6 + $0xf0] sm:$0xff]
    %v103 = vld [vmem:[#allocation6 + $0xf8] sm:$0xff]
    %v104 = vld [vmem:[#allocation6 + $0x100] sm:$0xff]
    %v105 = vld [vmem:[#allocation6 + $0x108] sm:$0xff]
    %v106 = vld [vmem:[#allocation6 + $0x110] sm:$0xff]
    %v107 = vld [vmem:[#allocation6 + $0x118] sm:$0xff]
    %v108 = vld [vmem:[#allocation6 + $0x120] sm:$0xff]
    %v109 = vld [vmem:[#allocation6 + $0x128] sm:$0xff]
    %v110 = vld [vmem:[#allocation6 + $0x130] sm:$0xff]
    %v111 = vld [vmem:[#allocation6 + $0x138] sm:$0xff]
    %v112 = vld [vmem:[#allocation6 + $0x140] sm:$0xff]
    %v113 = vld [vmem:[#allocation6 + $0x148] sm:$0xff]
    %v114 = vld [vmem:[#allocation6 + $0x150] sm:$0xff]
    %v115 = vld [vmem:[#allocation6 + $0x158] sm:$0xff]
    %v116 = vld [vmem:[#allocation6 + $0x160] sm:$0xff]
    %v117 = vld [vmem:[#allocation6 + $0x168] sm:$0xff]
    %v118 = vld [vmem:[#allocation6 + $0x170] sm:$0xff]
    %v119 = vld [vmem:[#allocation6 + $0x178] sm:$0xff]
    %v120 = vld [vmem:[#allocation6 + $0x180] sm:$0xff]
    %v121 = vld [vmem:[#allocation6 + $0x188] sm:$0xff]
    %v122 = vld [vmem:[#allocation6 + $0x190] sm:$0xff]
    %v123 = vld [vmem:[#allocation6 + $0x198] sm:$0xff]
    %v124 = vld [vmem:[#allocation6 + $0x1a0] sm:$0xff]
    %v125 = vld [vmem:[#allocation6 + $0x1a8] sm:$0xff]
    %v126 = vld [vmem:[#allocation6 + $0x1b0] sm:$0xff]
    %v127 = vld [vmem:[#allocation6 + $0x1b8] sm:$0xff]
    %v128 = vld [vmem:[#allocation6 + $0x1c0] sm:$0xff]
    %v129 = vld [vmem:[#allocation6 + $0x1c8] sm:$0xff]
    %v130 = vld [vmem:[#allocation6 + $0x1d0] sm:$0xff]
    %v131 = vld [vmem:[#allocation6 + $0x1d8] sm:$0xff]
    %v132 = vld [vmem:[#allocation6 + $0x1e0] sm:$0xff]
    %v133 = vld [vmem:[#allocation6 + $0x1e8] sm:$0xff]
    %v134 = vld [vmem:[%s4] sm:$0x1]
    %v136 = vlaneseq
    %v137 = vshrl.u32 %v136, 7
    %v138 = vsub.s32 0, %v137
    %v139 = vrot.slane %v71, %v138
    %v140 = vlaneseq
    %v141 = vshrl.u32 %v140, 7
    %v142 = vsub.s32 1, %v141
    %v143 = vrot.slane %v71, %v142
    %v144 = vlaneseq
    %v145 = vshrl.u32 %v144, 7
    %v146 = vsub.s32 2, %v145
    %v147 = vrot.slane %v71, %v146
    %v148 = vlaneseq
    %v149 = vshrl.u32 %v148, 7
    %v150 = vsub.s32 3, %v149
    %v151 = vrot.slane %v71, %v150
    %vm155 = vcmask 916480
    %v156 = vsel %vm155, %v151, 0
    %158 = vmatprep.subr.mxu0 0.0
    %159 = vmatpush1.msra.mxu0 %v87
    %160 = vmatprep.subr.mxu0 0.0
    %161 = vmatpush1.msra.mxu0 %v86
    %162 = vmatprep.subr.mxu0 0.0
    %163 = vmatpush1.msra.mxu0 %v85
    %164 = vmatprep.subr.mxu0 0.0
    %165 = vmatpush1.msra.mxu0 %v84
    %166 = vmatprep.subr.mxu0 0.0
    %167 = vmatpush1.msra.mxu0 %v83
    %168 = vmatprep.subr.mxu0 0.0
    %169 = vmatpush1.msra.mxu0 %v82
    %170 = vmatprep.subr.mxu0 0.0
    %171 = vmatpush1.msra.mxu0 %v81
    %172 = vmatprep.subr.mxu0 0.0
    %173 = vmatpush1.msra.mxu0 %v80
    %174 = vmatprep.subr.mxu0 0.0
    %175 = vmatpush1.msra.mxu0 %v79
    %176 = vmatprep.subr.mxu0 0.0
    %177 = vmatpush1.msra.mxu0 %v78
    %178 = vmatprep.subr.mxu0 0.0
    %179 = vmatpush1.msra.mxu0 %v77
    %180 = vmatprep.subr.mxu0 0.0
    %181 = vmatpush1.msra.mxu0 %v76
    %182 = vmatprep.subr.mxu0 0.0
    %183 = vmatpush1.msra.mxu0 %v75
    %184 = vmatprep.subr.mxu0 0.0
    %185 = vmatpush1.msra.mxu0 %v74
    %186 = vmatprep.subr.mxu0 0.0
    %187 = vmatpush1.msra.mxu0 %v73
    %188 = vmatprep.subr.mxu0 0.0
    %189 = vmatpush1.msra.mxu0 %v72
    %190 = vmatprep.subr.mxu0 0.0
    %191 = vmatpush2.msra.mxu0 %v103
    %192 = vmatprep.subr.mxu0 0.0
    %193 = vmatpush2.msra.mxu0 %v102
    %194 = vmatprep.subr.mxu0 0.0
    %195 = vmatpush2.msra.mxu0 %v101
    %196 = vmatprep.subr.mxu0 0.0
    %197 = vmatpush2.msra.mxu0 %v100
    %198 = vmatprep.subr.mxu0 0.0
    %199 = vmatpush2.msra.mxu0 %v99
    %200 = vmatprep.subr.mxu0 0.0
    %201 = vmatpush2.msra.mxu0 %v98
    %202 = vmatprep.subr.mxu0 0.0
    %203 = vmatpush2.msra.mxu0 %v97
    %204 = vmatprep.subr.mxu0 0.0
    %205 = vmatpush2.msra.mxu0 %v96
    %206 = vmatprep.subr.mxu0 0.0
    %207 = vmatpush2.msra.mxu0 %v95
    %208 = vmatprep.subr.mxu0 0.0
    %209 = vmatpush2.msra.mxu0 %v94
    %210 = vmatprep.subr.mxu0 0.0
    %211 = vmatpush2.msra.mxu0 %v93
    %212 = vmatprep.subr.mxu0 0.0
    %213 = vmatpush2.msra.mxu0 %v92
    %214 = vmatprep.subr.mxu0 0.0
    %215 = vmatpush2.msra.mxu0 %v91
    %216 = vmatprep.subr.mxu0 0.0
    %217 = vmatpush2.msra.mxu0 %v90
    %218 = vmatprep.subr.mxu0 0.0
    %219 = vmatpush2.msra.mxu0 %v89
    %220 = vmatprep.subr.mxu0 0.0
    %221 = vmatpush2.msra.mxu0 %v88
    %222 = vmatprep.mubr.f32.mxu0 %v143
    %223 = vmatmul.mubr.f32.gmra.mxu0 %v139
    %v224 = vpop.f32.mrf.mxu0
    %v225 = vadd.f32 %v134, %v224
    %v226 = vpop.f32.mrf.mxu0
    %227 = vdwg.mxu0
    %228 = vmatprep.subr.mxu0 0.0
    %229 = vmatpush1.msra.mxu0 %v119
    %230 = vmatprep.subr.mxu0 0.0
    %231 = vmatpush1.msra.mxu0 %v118
    %232 = vmatprep.subr.mxu0 0.0
    %233 = vmatpush1.msra.mxu0 %v117
    %234 = vmatprep.subr.mxu0 0.0
    %235 = vmatpush1.msra.mxu0 %v116
    %236 = vmatprep.subr.mxu0 0.0
    %237 = vmatpush1.msra.mxu0 %v115
    %238 = vmatprep.subr.mxu0 0.0
    %239 = vmatpush1.msra.mxu0 %v114
    %240 = vmatprep.subr.mxu0 0.0
    %241 = vmatpush1.msra.mxu0 %v113
    %242 = vmatprep.subr.mxu0 0.0
    %243 = vmatpush1.msra.mxu0 %v112
    %244 = vmatprep.subr.mxu0 0.0
    %245 = vmatpush1.msra.mxu0 %v111
    %246 = vmatprep.subr.mxu0 0.0
    %247 = vmatpush1.msra.mxu0 %v110
    %248 = vmatprep.subr.mxu0 0.0
    %249 = vmatpush1.msra.mxu0 %v109
    %250 = vmatprep.subr.mxu0 0.0
    %251 = vmatpush1.msra.mxu0 %v108
    %252 = vmatprep.subr.mxu0 0.0
    %253 = vmatpush1.msra.mxu0 %v107
    %254 = vmatprep.subr.mxu0 0.0
    %255 = vmatpush1.msra.mxu0 %v106
    %256 = vmatprep.subr.mxu0 0.0
    %257 = vmatpush1.msra.mxu0 %v105
    %258 = vmatprep.subr.mxu0 0.0
    %259 = vmatpush1.msra.mxu0 %v104
    %260 = vmatprep.subr.mxu0 0.0
    %261 = vmatpush2.msra.mxu0 0.0
    %262 = vmatprep.subr.mxu0 0.0
    %263 = vmatpush2.msra.mxu0 0.0
    %264 = vmatprep.subr.mxu0 0.0
    %265 = vmatpush2.msra.mxu0 %v133
    %266 = vmatprep.subr.mxu0 0.0
    %267 = vmatpush2.msra.mxu0 %v132
    %268 = vmatprep.subr.mxu0 0.0
    %269 = vmatpush2.msra.mxu0 %v131
    %270 = vmatprep.subr.mxu0 0.0
    %271 = vmatpush2.msra.mxu0 %v130
    %272 = vmatprep.subr.mxu0 0.0
    %273 = vmatpush2.msra.mxu0 %v129
    %274 = vmatprep.subr.mxu0 0.0
    %275 = vmatpush2.msra.mxu0 %v128
    %276 = vmatprep.subr.mxu0 0.0
    %277 = vmatpush2.msra.mxu0 %v127
    %278 = vmatprep.subr.mxu0 0.0
    %279 = vmatpush2.msra.mxu0 %v126
    %280 = vmatprep.subr.mxu0 0.0
    %281 = vmatpush2.msra.mxu0 %v125
    %282 = vmatprep.subr.mxu0 0.0
    %283 = vmatpush2.msra.mxu0 %v124
    %284 = vmatprep.subr.mxu0 0.0
    %285 = vmatpush2.msra.mxu0 %v123
    %286 = vmatprep.subr.mxu0 0.0
    %287 = vmatpush2.msra.mxu0 %v122
    %288 = vmatprep.subr.mxu0 0.0
    %289 = vmatpush2.msra.mxu0 %v121
    %290 = vmatprep.subr.mxu0 0.0
    %291 = vmatpush2.msra.mxu0 %v120
    %292 = vmatprep.mubr.f32.mxu0 %v156
    %293 = vmatmul.mubr.f32.gmra.mxu0 %v147
    %v294 = vpop.f32.mrf.mxu0
    %v295 = vadd.f32 %v225, %v294
    %v296 = vpop.f32.mrf.mxu0
    %297 = vdwg.mxu0
    %v298 = vld [vmem:[%s1] sm:$0x7f]
    %v299 = vld [vmem:[%s5] sm:$0x7f]
    %301 = vset.pattern.permute.xlu0 0
    %302 = vperm.xlu0 %301, %v298
    %v303 = vpop.permute.xlu0 %302
    %v305 = vmul.f32 %v303, %v299
    %s306 = scalar_lea.vmem %s5, 8
    %v307 = vld [vmem:[%s306] sm:$0x7f]
    %v308 = vadd.f32 %v305, %v307
    %s309 = scalar_lea.vmem %s5, 16
    %v310 = vld [vmem:[%s309] sm:$0x7f]
    %312 = vrot.lane.b32.xlu0 %v295, 96
    %v313 = vpop.permute.xlu0 %312
    %v315 = vadd.f32 %v308, %v313
    %v316 = vxor.u32 %v315, 2147483648
    %v317 = vmul.f32 %v316, 1.442695
    %v318 = vpow.pop %v317
    %v319 = vadd.f32 %v318, 1.0
    %v320 = vrcp.pop %v319
    %v321 = vmul.f32 1.0, %v320
    %322 = vrot.lane.b32.xlu0 %v295, 32
    %v323 = vpop.permute.xlu0 %322
    %v325 = vmul.f32 %v321, %v323
    %327 = vrot.lane.b32.xlu0 %v325, 64
    %v328 = vpop.permute.xlu0 %327
    %v330 = vadd.f32 %v308, %v328
    %v331 = vtanh.pop %v330
    %v332 = vsub.f32 1.0, %v321
    %334 = vrot.lane.b32.xlu0 %v331, 96
    %v335 = vpop.permute.xlu0 %334
    %v337 = vmul.f32 %v332, %v335
    %v338 = vadd.f32 %v337, %v325
    %s339 = scalar_lea.vmem [#allocation7], 32
    %v340 = vld [vmem:[%s339] sm:$0xff]
    %v341 = vld [vmem:[%s339 + $0x8] sm:$0xff]
    %v342 = vld [vmem:[%s339 + $0x10] sm:$0xff]
    %v343 = vld [vmem:[%s339 + $0x18] sm:$0xff]
    %345 = vrot.lane.b32.xlu0 %v338, 96
    %v346 = vpop.permute.xlu0 %345
    %vm347 = vcmask 261120
    %v348 = vsel %vm347, %v346, 0
    %350 = vmatprep.subr.mxu0 0.0
    %351 = vmatpush1.msra.mxu0 0.0
    %352 = vmatprep.subr.mxu0 0.0
    %353 = vmatpush1.msra.mxu0 0.0
    %354 = vmatprep.subr.mxu0 0.0
    %355 = vmatpush1.msra.mxu0 0.0
    %356 = vmatprep.subr.mxu0 0.0
    %357 = vmatpush1.msra.mxu0 0.0
    %358 = vmatprep.subr.mxu0 0.0
    %359 = vmatpush1.msra.mxu0 0.0
    %360 = vmatprep.subr.mxu0 0.0
    %361 = vmatpush1.msra.mxu0 0.0
    %362 = vmatprep.subr.mxu0 0.0
    %363 = vmatpush1.msra.mxu0 0.0
    %364 = vmatprep.subr.mxu0 0.0
    %365 = vmatpush1.msra.mxu0 0.0
    %366 = vmatprep.subr.mxu0 0.0
    %367 = vmatpush1.msra.mxu0 0.0
    %368 = vmatprep.subr.mxu0 0.0
    %369 = vmatpush1.msra.mxu0 0.0
    %370 = vmatprep.subr.mxu0 0.0
    %371 = vmatpush1.msra.mxu0 0.0
    %372 = vmatprep.subr.mxu0 0.0
    %373 = vmatpush1.msra.mxu0 0.0
    %374 = vmatprep.subr.mxu0 0.0
    %375 = vmatpush1.msra.mxu0 %v343
    %376 = vmatprep.subr.mxu0 0.0
    %377 = vmatpush1.msra.mxu0 %v342
    %378 = vmatprep.subr.mxu0 0.0
    %379 = vmatpush1.msra.mxu0 %v341
    %380 = vmatprep.subr.mxu0 0.0
    %381 = vmatpush1.msra.mxu0 %v340
    %382 = vmatprep.subr.mxu0 0.0
    %383 = vmatpush2.msra.mxu0 0.0
    %384 = vmatprep.subr.mxu0 0.0
    %385 = vmatpush2.msra.mxu0 0.0
    %386 = vmatprep.subr.mxu0 0.0
    %387 = vmatpush2.msra.mxu0 0.0
    %388 = vmatprep.subr.mxu0 0.0
    %389 = vmatpush2.msra.mxu0 0.0
    %390 = vmatprep.subr.mxu0 0.0
    %391 = vmatpush2.msra.mxu0 0.0
    %392 = vmatprep.subr.mxu0 0.0
    %393 = vmatpush2.msra.mxu0 0.0
    %394 = vmatprep.subr.mxu0 0.0
    %395 = vmatpush2.msra.mxu0 0.0
    %396 = vmatprep.subr.mxu0 0.0
    %397 = vmatpush2.msra.mxu0 0.0
    %398 = vmatprep.subr.mxu0 0.0
    %399 = vmatpush2.msra.mxu0 0.0
    %400 = vmatprep.subr.mxu0 0.0
    %401 = vmatpush2.msra.mxu0 0.0
    %402 = vmatprep.subr.mxu0 0.0
    %403 = vmatpush2.msra.mxu0 0.0
    %404 = vmatprep.subr.mxu0 0.0
    %405 = vmatpush2.msra.mxu0 0.0
    %406 = vmatprep.subr.mxu0 0.0
    %407 = vmatpush2.msra.mxu0 0.0
    %408 = vmatprep.subr.mxu0 0.0
    %409 = vmatpush2.msra.mxu0 0.0
    %410 = vmatprep.subr.mxu0 0.0
    %411 = vmatpush2.msra.mxu0 0.0
    %412 = vmatprep.subr.mxu0 0.0
    %413 = vmatpush2.msra.mxu0 0.0
    %414 = vmatprep.mubr.f32.mxu0 0.0
    %415 = vmatmul.mubr.f32.gmra.mxu0 %v348
    %v416 = vpop.f32.mrf.mxu0
    %v417 = vadd.f32 0.0, %v416
    %v418 = vpop.f32.mrf.mxu0
    %419 = vdwg.mxu0
    %v421 = vrot.slane %v310, 1
    %v423 = vadd.f32 %v417, %v421
    %v425 = vrot.slane %v417, 7
    %v427 = vadd.f32 %v308, %v425
    %v428 = vxor.u32 %v427, 2147483648
    %v429 = vmul.f32 %v428, 1.442695
    %v430 = vpow.pop %v429
    %v431 = vadd.f32 %v430, 1.0
    %v432 = vrcp.pop %v431
    %v433 = vmul.f32 1.0, %v432
    %v435 = vrot.slane %v423, 7
    %436 = vrot.lane.b32.xlu0 %v435, 64
    %v437 = vpop.permute.xlu0 %436
    %v439 = vmul.f32 %v433, %v437
    %441 = vrot.lane.b32.xlu0 %v439, 64
    %v442 = vpop.permute.xlu0 %441
    %v444 = vadd.f32 %v308, %v442
    %v445 = vtanh.pop %v444
    %v446 = vsub.f32 1.0, %v433
    %448 = vrot.lane.b32.xlu0 %v445, 96
    %v449 = vpop.permute.xlu0 %448
    %v451 = vmul.f32 %v446, %v449
    %v452 = vrot.slane %v338, 7
    %v454 = vmul.f32 %v433, %v452
    %v455 = vadd.f32 %v451, %v454
    %s456 = scalar_lea.vmem [#allocation7], 64
    %v457 = vld [vmem:[%s456] sm:$0xff]
    %v458 = vld [vmem:[%s456 + $0x8] sm:$0xff]
    %v459 = vld [vmem:[%s456 + $0x10] sm:$0xff]
    %v460 = vld [vmem:[%s456 + $0x18] sm:$0xff]
    %v462 = vrot.slane %v455, 1
    %463 = vrot.lane.b32.xlu0 %v462, 96
    %v464 = vpop.permute.xlu0 %463
    %v465 = vsel %vm347, %v464, 0
    %467 = vmatprep.subr.mxu0 0.0
    %468 = vmatpush1.msra.mxu0 0.0
    %469 = vmatprep.subr.mxu0 0.0
    %470 = vmatpush1.msra.mxu0 0.0
    %471 = vmatprep.subr.mxu0 0.0
    %472 = vmatpush1.msra.mxu0 0.0
    %473 = vmatprep.subr.mxu0 0.0
    %474 = vmatpush1.msra.mxu0 0.0
    %475 = vmatprep.subr.mxu0 0.0
    %476 = vmatpush1.msra.mxu0 0.0
    %477 = vmatprep.subr.mxu0 0.0
    %478 = vmatpush1.msra.mxu0 0.0
    %479 = vmatprep.subr.mxu0 0.0
    %480 = vmatpush1.msra.mxu0 0.0
    %481 = vmatprep.subr.mxu0 0.0
    %482 = vmatpush1.msra.mxu0 0.0
    %483 = vmatprep.subr.mxu0 0.0
    %484 = vmatpush1.msra.mxu0 0.0
    %485 = vmatprep.subr.mxu0 0.0
    %486 = vmatpush1.msra.mxu0 0.0
    %487 = vmatprep.subr.mxu0 0.0
    %488 = vmatpush1.msra.mxu0 0.0
    %489 = vmatprep.subr.mxu0 0.0
    %490 = vmatpush1.msra.mxu0 0.0
    %491 = vmatprep.subr.mxu0 0.0
    %492 = vmatpush1.msra.mxu0 %v460
    %493 = vmatprep.subr.mxu0 0.0
    %494 = vmatpush1.msra.mxu0 %v459
    %495 = vmatprep.subr.mxu0 0.0
    %496 = vmatpush1.msra.mxu0 %v458
    %497 = vmatprep.subr.mxu0 0.0
    %498 = vmatpush1.msra.mxu0 %v457
    %499 = vmatprep.subr.mxu0 0.0
    %500 = vmatpush2.msra.mxu0 0.0
    %501 = vmatprep.subr.mxu0 0.0
    %502 = vmatpush2.msra.mxu0 0.0
    %503 = vmatprep.subr.mxu0 0.0
    %504 = vmatpush2.msra.mxu0 0.0
    %505 = vmatprep.subr.mxu0 0.0
    %506 = vmatpush2.msra.mxu0 0.0
    %507 = vmatprep.subr.mxu0 0.0
    %508 = vmatpush2.msra.mxu0 0.0
    %509 = vmatprep.subr.mxu0 0.0
    %510 = vmatpush2.msra.mxu0 0.0
    %511 = vmatprep.subr.mxu0 0.0
    %512 = vmatpush2.msra.mxu0 0.0
    %513 = vmatprep.subr.mxu0 0.0
    %514 = vmatpush2.msra.mxu0 0.0
    %515 = vmatprep.subr.mxu0 0.0
    %516 = vmatpush2.msra.mxu0 0.0
    %517 = vmatprep.subr.mxu0 0.0
    %518 = vmatpush2.msra.mxu0 0.0
    %519 = vmatprep.subr.mxu0 0.0
    %520 = vmatpush2.msra.mxu0 0.0
    %521 = vmatprep.subr.mxu0 0.0
    %522 = vmatpush2.msra.mxu0 0.0
    %523 = vmatprep.subr.mxu0 0.0
    %524 = vmatpush2.msra.mxu0 0.0
    %525 = vmatprep.subr.mxu0 0.0
    %526 = vmatpush2.msra.mxu0 0.0
    %527 = vmatprep.subr.mxu0 0.0
    %528 = vmatpush2.msra.mxu0 0.0
    %529 = vmatprep.subr.mxu0 0.0
    %530 = vmatpush2.msra.mxu0 0.0
    %531 = vmatprep.mubr.f32.mxu0 0.0
    %532 = vmatmul.mubr.f32.gmra.mxu0 %v465
    %v533 = vpop.f32.mrf.mxu0
    %v534 = vadd.f32 0.0, %v533
    %v535 = vpop.f32.mrf.mxu0
    %536 = vdwg.mxu0
    %v537 = vrot.slane %v310, 2
    %v539 = vadd.f32 %v534, %v537
    %v541 = vrot.slane %v534, 6
    %v543 = vadd.f32 %v308, %v541
    %v544 = vxor.u32 %v543, 2147483648
    %v545 = vmul.f32 %v544, 1.442695
    %v546 = vpow.pop %v545
    %v547 = vadd.f32 %v546, 1.0
    %v548 = vrcp.pop %v547
    %v549 = vmul.f32 1.0, %v548
    %v551 = vrot.slane %v539, 6
    %552 = vrot.lane.b32.xlu0 %v551, 64
    %v553 = vpop.permute.xlu0 %552
    %v555 = vmul.f32 %v549, %v553
    %557 = vrot.lane.b32.xlu0 %v555, 64
    %v558 = vpop.permute.xlu0 %557
    %v560 = vadd.f32 %v308, %v558
    %v561 = vtanh.pop %v560
    %v562 = vsub.f32 1.0, %v549
    %564 = vrot.lane.b32.xlu0 %v561, 96
    %v565 = vpop.permute.xlu0 %564
    %v567 = vmul.f32 %v562, %v565
    %v568 = vrot.slane %v455, 7
    %v570 = vmul.f32 %v549, %v568
    %v571 = vadd.f32 %v567, %v570
    %s572 = scalar_lea.vmem [#allocation7], 96
    %v573 = vld [vmem:[%s572] sm:$0xff]
    %v574 = vld [vmem:[%s572 + $0x8] sm:$0xff]
    %v575 = vld [vmem:[%s572 + $0x10] sm:$0xff]
    %v576 = vld [vmem:[%s572 + $0x18] sm:$0xff]
    %v578 = vrot.slane %v571, 2
    %579 = vrot.lane.b32.xlu0 %v578, 96
    %v580 = vpop.permute.xlu0 %579
    %v581 = vsel %vm347, %v580, 0
    %583 = vmatprep.subr.mxu0 0.0
    %584 = vmatpush1.msra.mxu0 0.0
    %585 = vmatprep.subr.mxu0 0.0
    %586 = vmatpush1.msra.mxu0 0.0
    %587 = vmatprep.subr.mxu0 0.0
    %588 = vmatpush1.msra.mxu0 0.0
    %589 = vmatprep.subr.mxu0 0.0
    %590 = vmatpush1.msra.mxu0 0.0
    %591 = vmatprep.subr.mxu0 0.0
    %592 = vmatpush1.msra.mxu0 0.0
    %593 = vmatprep.subr.mxu0 0.0
    %594 = vmatpush1.msra.mxu0 0.0
    %595 = vmatprep.subr.mxu0 0.0
    %596 = vmatpush1.msra.mxu0 0.0
    %597 = vmatprep.subr.mxu0 0.0
    %598 = vmatpush1.msra.mxu0 0.0
    %599 = vmatprep.subr.mxu0 0.0
    %600 = vmatpush1.msra.mxu0 0.0
    %601 = vmatprep.subr.mxu0 0.0
    %602 = vmatpush1.msra.mxu0 0.0
    %603 = vmatprep.subr.mxu0 0.0
    %604 = vmatpush1.msra.mxu0 0.0
    %605 = vmatprep.subr.mxu0 0.0
    %606 = vmatpush1.msra.mxu0 0.0
    %607 = vmatprep.subr.mxu0 0.0
    %608 = vmatpush1.msra.mxu0 %v576
    %609 = vmatprep.subr.mxu0 0.0
    %610 = vmatpush1.msra.mxu0 %v575
    %611 = vmatprep.subr.mxu0 0.0
    %612 = vmatpush1.msra.mxu0 %v574
    %613 = vmatprep.subr.mxu0 0.0
    %614 = vmatpush1.msra.mxu0 %v573
    %615 = vmatprep.subr.mxu0 0.0
    %616 = vmatpush2.msra.mxu0 0.0
    %617 = vmatprep.subr.mxu0 0.0
    %618 = vmatpush2.msra.mxu0 0.0
    %619 = vmatprep.subr.mxu0 0.0
    %620 = vmatpush2.msra.mxu0 0.0
    %621 = vmatprep.subr.mxu0 0.0
    %622 = vmatpush2.msra.mxu0 0.0
    %623 = vmatprep.subr.mxu0 0.0
    %624 = vmatpush2.msra.mxu0 0.0
    %625 = vmatprep.subr.mxu0 0.0
    %626 = vmatpush2.msra.mxu0 0.0
    %627 = vmatprep.subr.mxu0 0.0
    %628 = vmatpush2.msra.mxu0 0.0
    %629 = vmatprep.subr.mxu0 0.0
    %630 = vmatpush2.msra.mxu0 0.0
    %631 = vmatprep.subr.mxu0 0.0
    %632 = vmatpush2.msra.mxu0 0.0
    %633 = vmatprep.subr.mxu0 0.0
    %634 = vmatpush2.msra.mxu0 0.0
    %635 = vmatprep.subr.mxu0 0.0
    %636 = vmatpush2.msra.mxu0 0.0
    %637 = vmatprep.subr.mxu0 0.0
    %638 = vmatpush2.msra.mxu0 0.0
    %639 = vmatprep.subr.mxu0 0.0
    %640 = vmatpush2.msra.mxu0 0.0
    %641 = vmatprep.subr.mxu0 0.0
    %642 = vmatpush2.msra.mxu0 0.0
    %643 = vmatprep.subr.mxu0 0.0
    %644 = vmatpush2.msra.mxu0 0.0
    %645 = vmatprep.subr.mxu0 0.0
    %646 = vmatpush2.msra.mxu0 0.0
    %647 = vmatprep.mubr.f32.mxu0 0.0
    %648 = vmatmul.mubr.f32.gmra.mxu0 %v581
    %v649 = vpop.f32.mrf.mxu0
    %v650 = vadd.f32 0.0, %v649
    %v651 = vpop.f32.mrf.mxu0
    %652 = vdwg.mxu0
    %v653 = vrot.slane %v310, 3
    %v655 = vadd.f32 %v650, %v653
    %v657 = vrot.slane %v650, 5
    %v659 = vadd.f32 %v308, %v657
    %v660 = vxor.u32 %v659, 2147483648
    %v661 = vmul.f32 %v660, 1.442695
    %v662 = vpow.pop %v661
    %v663 = vadd.f32 %v662, 1.0
    %v664 = vrcp.pop %v663
    %v665 = vmul.f32 1.0, %v664
    %v667 = vrot.slane %v655, 5
    %668 = vrot.lane.b32.xlu0 %v667, 64
    %v669 = vpop.permute.xlu0 %668
    %v671 = vmul.f32 %v665, %v669
    %673 = vrot.lane.b32.xlu0 %v671, 64
    %v674 = vpop.permute.xlu0 %673
    %v676 = vadd.f32 %v308, %v674
    %v677 = vtanh.pop %v676
    %v678 = vsub.f32 1.0, %v665
    %680 = vrot.lane.b32.xlu0 %v677, 96
    %v681 = vpop.permute.xlu0 %680
    %v683 = vmul.f32 %v678, %v681
    %v684 = vrot.slane %v571, 7
    %v686 = vmul.f32 %v665, %v684
    %v687 = vadd.f32 %v683, %v686
    %s688 = scalar_lea.vmem [#allocation7], 128
    %v689 = vld [vmem:[%s688] sm:$0xff]
    %v690 = vld [vmem:[%s688 + $0x8] sm:$0xff]
    %v691 = vld [vmem:[%s688 + $0x10] sm:$0xff]
    %v692 = vld [vmem:[%s688 + $0x18] sm:$0xff]
    %v694 = vrot.slane %v687, 3
    %695 = vrot.lane.b32.xlu0 %v694, 96
    %v696 = vpop.permute.xlu0 %695
    %v697 = vsel %vm347, %v696, 0
    %699 = vmatprep.subr.mxu0 0.0
    %700 = vmatpush1.msra.mxu0 0.0
    %701 = vmatprep.subr.mxu0 0.0
    %702 = vmatpush1.msra.mxu0 0.0
    %703 = vmatprep.subr.mxu0 0.0
    %704 = vmatpush1.msra.mxu0 0.0
    %705 = vmatprep.subr.mxu0 0.0
    %706 = vmatpush1.msra.mxu0 0.0
    %707 = vmatprep.subr.mxu0 0.0
    %708 = vmatpush1.msra.mxu0 0.0
    %709 = vmatprep.subr.mxu0 0.0
    %710 = vmatpush1.msra.mxu0 0.0
    %711 = vmatprep.subr.mxu0 0.0
    %712 = vmatpush1.msra.mxu0 0.0
    %713 = vmatprep.subr.mxu0 0.0
    %714 = vmatpush1.msra.mxu0 0.0
    %715 = vmatprep.subr.mxu0 0.0
    %716 = vmatpush1.msra.mxu0 0.0
    %717 = vmatprep.subr.mxu0 0.0
    %718 = vmatpush1.msra.mxu0 0.0
    %719 = vmatprep.subr.mxu0 0.0
    %720 = vmatpush1.msra.mxu0 0.0
    %721 = vmatprep.subr.mxu0 0.0
    %722 = vmatpush1.msra.mxu0 0.0
    %723 = vmatprep.subr.mxu0 0.0
    %724 = vmatpush1.msra.mxu0 %v692
    %725 = vmatprep.subr.mxu0 0.0
    %726 = vmatpush1.msra.mxu0 %v691
    %727 = vmatprep.subr.mxu0 0.0
    %728 = vmatpush1.msra.mxu0 %v690
    %729 = vmatprep.subr.mxu0 0.0
    %730 = vmatpush1.msra.mxu0 %v689
    %731 = vmatprep.subr.mxu0 0.0
    %732 = vmatpush2.msra.mxu0 0.0
    %733 = vmatprep.subr.mxu0 0.0
    %734 = vmatpush2.msra.mxu0 0.0
    %735 = vmatprep.subr.mxu0 0.0
    %736 = vmatpush2.msra.mxu0 0.0
    %737 = vmatprep.subr.mxu0 0.0
    %738 = vmatpush2.msra.mxu0 0.0
    %739 = vmatprep.subr.mxu0 0.0
    %740 = vmatpush2.msra.mxu0 0.0
    %741 = vmatprep.subr.mxu0 0.0
    %742 = vmatpush2.msra.mxu0 0.0
    %743 = vmatprep.subr.mxu0 0.0
    %744 = vmatpush2.msra.mxu0 0.0
    %745 = vmatprep.subr.mxu0 0.0
    %746 = vmatpush2.msra.mxu0 0.0
    %747 = vmatprep.subr.mxu0 0.0
    %748 = vmatpush2.msra.mxu0 0.0
    %749 = vmatprep.subr.mxu0 0.0
    %750 = vmatpush2.msra.mxu0 0.0
    %751 = vmatprep.subr.mxu0 0.0
    %752 = vmatpush2.msra.mxu0 0.0
    %753 = vmatprep.subr.mxu0 0.0
    %754 = vmatpush2.msra.mxu0 0.0
    %755 = vmatprep.subr.mxu0 0.0
    %756 = vmatpush2.msra.mxu0 0.0
    %757 = vmatprep.subr.mxu0 0.0
    %758 = vmatpush2.msra.mxu0 0.0
    %759 = vmatprep.subr.mxu0 0.0
    %760 = vmatpush2.msra.mxu0 0.0
    %761 = vmatprep.subr.mxu0 0.0
    %762 = vmatpush2.msra.mxu0 0.0
    %763 = vmatprep.mubr.f32.mxu0 0.0
    %764 = vmatmul.mubr.f32.gmra.mxu0 %v697
    %v765 = vpop.f32.mrf.mxu0
    %v766 = vadd.f32 0.0, %v765
    %v767 = vpop.f32.mrf.mxu0
    %768 = vdwg.mxu0
    %v769 = vrot.slane %v310, 4
    %v771 = vadd.f32 %v766, %v769
    %v773 = vrot.slane %v766, 4
    %v775 = vadd.f32 %v308, %v773
    %v776 = vxor.u32 %v775, 2147483648
    %v777 = vmul.f32 %v776, 1.442695
    %v778 = vpow.pop %v777
    %v779 = vadd.f32 %v778, 1.0
    %v780 = vrcp.pop %v779
    %v781 = vmul.f32 1.0, %v780
    %v783 = vrot.slane %v771, 4
    %784 = vrot.lane.b32.xlu0 %v783, 64
    %v785 = vpop.permute.xlu0 %784
    %v787 = vmul.f32 %v781, %v785
    %789 = vrot.lane.b32.xlu0 %v787, 64
    %v790 = vpop.permute.xlu0 %789
    %v792 = vadd.f32 %v308, %v790
    %v793 = vtanh.pop %v792
    %v794 = vsub.f32 1.0, %v781
    %796 = vrot.lane.b32.xlu0 %v793, 96
    %v797 = vpop.permute.xlu0 %796
    %v799 = vmul.f32 %v794, %v797
    %v800 = vrot.slane %v687, 7
    %v802 = vmul.f32 %v781, %v800
    %v803 = vadd.f32 %v799, %v802
    %s804 = scalar_lea.vmem [#allocation7], 160
    %v805 = vld [vmem:[%s804] sm:$0xff]
    %v806 = vld [vmem:[%s804 + $0x8] sm:$0xff]
    %v807 = vld [vmem:[%s804 + $0x10] sm:$0xff]
    %v808 = vld [vmem:[%s804 + $0x18] sm:$0xff]
    %v810 = vrot.slane %v803, 4
    %811 = vrot.lane.b32.xlu0 %v810, 96
    %v812 = vpop.permute.xlu0 %811
    %v813 = vsel %vm347, %v812, 0
    %815 = vmatprep.subr.mxu0 0.0
    %816 = vmatpush1.msra.mxu0 0.0
    %817 = vmatprep.subr.mxu0 0.0
    %818 = vmatpush1.msra.mxu0 0.0
    %819 = vmatprep.subr.mxu0 0.0
    %820 = vmatpush1.msra.mxu0 0.0
    %821 = vmatprep.subr.mxu0 0.0
    %822 = vmatpush1.msra.mxu0 0.0
    %823 = vmatprep.subr.mxu0 0.0
    %824 = vmatpush1.msra.mxu0 0.0
    %825 = vmatprep.subr.mxu0 0.0
    %826 = vmatpush1.msra.mxu0 0.0
    %827 = vmatprep.subr.mxu0 0.0
    %828 = vmatpush1.msra.mxu0 0.0
    %829 = vmatprep.subr.mxu0 0.0
    %830 = vmatpush1.msra.mxu0 0.0
    %831 = vmatprep.subr.mxu0 0.0
    %832 = vmatpush1.msra.mxu0 0.0
    %833 = vmatprep.subr.mxu0 0.0
    %834 = vmatpush1.msra.mxu0 0.0
    %835 = vmatprep.subr.mxu0 0.0
    %836 = vmatpush1.msra.mxu0 0.0
    %837 = vmatprep.subr.mxu0 0.0
    %838 = vmatpush1.msra.mxu0 0.0
    %839 = vmatprep.subr.mxu0 0.0
    %840 = vmatpush1.msra.mxu0 %v808
    %841 = vmatprep.subr.mxu0 0.0
    %842 = vmatpush1.msra.mxu0 %v807
    %843 = vmatprep.subr.mxu0 0.0
    %844 = vmatpush1.msra.mxu0 %v806
    %845 = vmatprep.subr.mxu0 0.0
    %846 = vmatpush1.msra.mxu0 %v805
    %847 = vmatprep.subr.mxu0 0.0
    %848 = vmatpush2.msra.mxu0 0.0
    %849 = vmatprep.subr.mxu0 0.0
    %850 = vmatpush2.msra.mxu0 0.0
    %851 = vmatprep.subr.mxu0 0.0
    %852 = vmatpush2.msra.mxu0 0.0
    %853 = vmatprep.subr.mxu0 0.0
    %854 = vmatpush2.msra.mxu0 0.0
    %855 = vmatprep.subr.mxu0 0.0
    %856 = vmatpush2.msra.mxu0 0.0
    %857 = vmatprep.subr.mxu0 0.0
    %858 = vmatpush2.msra.mxu0 0.0
    %859 = vmatprep.subr.mxu0 0.0
    %860 = vmatpush2.msra.mxu0 0.0
    %861 = vmatprep.subr.mxu0 0.0
    %862 = vmatpush2.msra.mxu0 0.0
    %863 = vmatprep.subr.mxu0 0.0
    %864 = vmatpush2.msra.mxu0 0.0
    %865 = vmatprep.subr.mxu0 0.0
    %866 = vmatpush2.msra.mxu0 0.0
    %867 = vmatprep.subr.mxu0 0.0
    %868 = vmatpush2.msra.mxu0 0.0
    %869 = vmatprep.subr.mxu0 0.0
    %870 = vmatpush2.msra.mxu0 0.0
    %871 = vmatprep.subr.mxu0 0.0
    %872 = vmatpush2.msra.mxu0 0.0
    %873 = vmatprep.subr.mxu0 0.0
    %874 = vmatpush2.msra.mxu0 0.0
    %875 = vmatprep.subr.mxu0 0.0
    %876 = vmatpush2.msra.mxu0 0.0
    %877 = vmatprep.subr.mxu0 0.0
    %878 = vmatpush2.msra.mxu0 0.0
    %879 = vmatprep.mubr.f32.mxu0 0.0
    %880 = vmatmul.mubr.f32.gmra.mxu0 %v813
    %v881 = vpop.f32.mrf.mxu0
    %v882 = vadd.f32 0.0, %v881
    %v883 = vpop.f32.mrf.mxu0
    %884 = vdwg.mxu0
    %v885 = vrot.slane %v310, 5
    %v887 = vadd.f32 %v882, %v885
    %v889 = vrot.slane %v882, 3
    %v891 = vadd.f32 %v308, %v889
    %v892 = vxor.u32 %v891, 2147483648
    %v893 = vmul.f32 %v892, 1.442695
    %v894 = vpow.pop %v893
    %v895 = vadd.f32 %v894, 1.0
    %v896 = vrcp.pop %v895
    %v897 = vmul.f32 1.0, %v896
    %v899 = vrot.slane %v887, 3
    %900 = vrot.lane.b32.xlu0 %v899, 64
    %v901 = vpop.permute.xlu0 %900
    %v903 = vmul.f32 %v897, %v901
    %905 = vrot.lane.b32.xlu0 %v903, 64
    %v906 = vpop.permute.xlu0 %905
    %v908 = vadd.f32 %v308, %v906
    %v909 = vtanh.pop %v908
    %v910 = vsub.f32 1.0, %v897
    %912 = vrot.lane.b32.xlu0 %v909, 96
    %v913 = vpop.permute.xlu0 %912
    %v915 = vmul.f32 %v910, %v913
    %v916 = vrot.slane %v803, 7
    %v918 = vmul.f32 %v897, %v916
    %v919 = vadd.f32 %v915, %v918
    %s920 = scalar_lea.vmem [#allocation7], 192
    %v921 = vld [vmem:[%s920] sm:$0xff]
    %v922 = vld [vmem:[%s920 + $0x8] sm:$0xff]
    %v923 = vld [vmem:[%s920 + $0x10] sm:$0xff]
    %v924 = vld [vmem:[%s920 + $0x18] sm:$0xff]
    %v926 = vrot.slane %v919, 5
    %927 = vrot.lane.b32.xlu0 %v926, 96
    %v928 = vpop.permute.xlu0 %927
    %v929 = vsel %vm347, %v928, 0
    %931 = vmatprep.subr.mxu0 0.0
    %932 = vmatpush1.msra.mxu0 0.0
    %933 = vmatprep.subr.mxu0 0.0
    %934 = vmatpush1.msra.mxu0 0.0
    %935 = vmatprep.subr.mxu0 0.0
    %936 = vmatpush1.msra.mxu0 0.0
    %937 = vmatprep.subr.mxu0 0.0
    %938 = vmatpush1.msra.mxu0 0.0
    %939 = vmatprep.subr.mxu0 0.0
    %940 = vmatpush1.msra.mxu0 0.0
    %941 = vmatprep.subr.mxu0 0.0
    %942 = vmatpush1.msra.mxu0 0.0
    %943 = vmatprep.subr.mxu0 0.0
    %944 = vmatpush1.msra.mxu0 0.0
    %945 = vmatprep.subr.mxu0 0.0
    %946 = vmatpush1.msra.mxu0 0.0
    %947 = vmatprep.subr.mxu0 0.0
    %948 = vmatpush1.msra.mxu0 0.0
    %949 = vmatprep.subr.mxu0 0.0
    %950 = vmatpush1.msra.mxu0 0.0
    %951 = vmatprep.subr.mxu0 0.0
    %952 = vmatpush1.msra.mxu0 0.0
    %953 = vmatprep.subr.mxu0 0.0
    %954 = vmatpush1.msra.mxu0 0.0
    %955 = vmatprep.subr.mxu0 0.0
    %956 = vmatpush1.msra.mxu0 %v924
    %957 = vmatprep.subr.mxu0 0.0
    %958 = vmatpush1.msra.mxu0 %v923
    %959 = vmatprep.subr.mxu0 0.0
    %960 = vmatpush1.msra.mxu0 %v922
    %961 = vmatprep.subr.mxu0 0.0
    %962 = vmatpush1.msra.mxu0 %v921
    %963 = vmatprep.subr.mxu0 0.0
    %964 = vmatpush2.msra.mxu0 0.0
    %965 = vmatprep.subr.mxu0 0.0
    %966 = vmatpush2.msra.mxu0 0.0
    %967 = vmatprep.subr.mxu0 0.0
    %968 = vmatpush2.msra.mxu0 0.0
    %969 = vmatprep.subr.mxu0 0.0
    %970 = vmatpush2.msra.mxu0 0.0
    %971 = vmatprep.subr.mxu0 0.0
    %972 = vmatpush2.msra.mxu0 0.0
    %973 = vmatprep.subr.mxu0 0.0
    %974 = vmatpush2.msra.mxu0 0.0
    %975 = vmatprep.subr.mxu0 0.0
    %976 = vmatpush2.msra.mxu0 0.0
    %977 = vmatprep.subr.mxu0 0.0
    %978 = vmatpush2.msra.mxu0 0.0
    %979 = vmatprep.subr.mxu0 0.0
    %980 = vmatpush2.msra.mxu0 0.0
    %981 = vmatprep.subr.mxu0 0.0
    %982 = vmatpush2.msra.mxu0 0.0
    %983 = vmatprep.subr.mxu0 0.0
    %984 = vmatpush2.msra.mxu0 0.0
    %985 = vmatprep.subr.mxu0 0.0
    %986 = vmatpush2.msra.mxu0 0.0
    %987 = vmatprep.subr.mxu0 0.0
    %988 = vmatpush2.msra.mxu0 0.0
    %989 = vmatprep.subr.mxu0 0.0
    %990 = vmatpush2.msra.mxu0 0.0
    %991 = vmatprep.subr.mxu0 0.0
    %992 = vmatpush2.msra.mxu0 0.0
    %993 = vmatprep.subr.mxu0 0.0
    %994 = vmatpush2.msra.mxu0 0.0
    %995 = vmatprep.mubr.f32.mxu0 0.0
    %996 = vmatmul.mubr.f32.gmra.mxu0 %v929
    %v997 = vpop.f32.mrf.mxu0
    %v998 = vadd.f32 0.0, %v997
    %v999 = vpop.f32.mrf.mxu0
    %1000 = vdwg.mxu0
    %v1001 = vrot.slane %v310, 6
    %v1003 = vadd.f32 %v998, %v1001
    %v1005 = vrot.slane %v998, 2
    %v1007 = vadd.f32 %v308, %v1005
    %v1008 = vxor.u32 %v1007, 2147483648
    %v1009 = vmul.f32 %v1008, 1.442695
    %v1010 = vpow.pop %v1009
    %v1011 = vadd.f32 %v1010, 1.0
    %v1012 = vrcp.pop %v1011
    %v1013 = vmul.f32 1.0, %v1012
    %v1015 = vrot.slane %v1003, 2
    %1016 = vrot.lane.b32.xlu0 %v1015, 64
    %v1017 = vpop.permute.xlu0 %1016
    %v1019 = vmul.f32 %v1013, %v1017
    %1021 = vrot.lane.b32.xlu0 %v1019, 64
    %v1022 = vpop.permute.xlu0 %1021
    %v1024 = vadd.f32 %v308, %v1022
    %v1025 = vtanh.pop %v1024
    %v1026 = vsub.f32 1.0, %v1013
    %1028 = vrot.lane.b32.xlu0 %v1025, 96
    %v1029 = vpop.permute.xlu0 %1028
    %v1031 = vmul.f32 %v1026, %v1029
    %v1032 = vrot.slane %v919, 7
    %v1034 = vmul.f32 %v1013, %v1032
    %v1035 = vadd.f32 %v1031, %v1034
    %s1036 = sld [smem:[#allocation2]]
    %s1037 = sld [smem:[#allocation2 + $0x1]]
    %v1038 = vld [vmem:[%s7] sm:$0xff]
    %v1039 = vld [vmem:[%s7 + $0x8] sm:$0xff]
    %v1040 = vld [vmem:[%s7 + $0x10] sm:$0xff]
    %v1041 = vld [vmem:[%s7 + $0x18] sm:$0xff]
    %v1042 = vld [vmem:[%s7 + $0x20] sm:$0x1]
    %v1043 = vstv %s1036
    %v1044 = vmul.f32 %v1043, %v1042
    %v1046 = vrot.slane %v1035, 6
    %1047 = vrot.lane.b32.xlu0 %v1046, 96
    %v1048 = vpop.permute.xlu0 %1047
    %v1049 = vsel %vm347, %v1048, 0
    %1051 = vmatprep.subr.mxu0 0.0
    %1052 = vmatpush1.msra.mxu0 0.0
    %1053 = vmatprep.subr.mxu0 0.0
    %1054 = vmatpush1.msra.mxu0 0.0
    %1055 = vmatprep.subr.mxu0 0.0
    %1056 = vmatpush1.msra.mxu0 0.0
    %1057 = vmatprep.subr.mxu0 0.0
    %1058 = vmatpush1.msra.mxu0 0.0
    %1059 = vmatprep.subr.mxu0 0.0
    %1060 = vmatpush1.msra.mxu0 0.0
    %1061 = vmatprep.subr.mxu0 0.0
    %1062 = vmatpush1.msra.mxu0 0.0
    %1063 = vmatprep.subr.mxu0 0.0
    %1064 = vmatpush1.msra.mxu0 0.0
    %1065 = vmatprep.subr.mxu0 0.0
    %1066 = vmatpush1.msra.mxu0 0.0
    %1067 = vmatprep.subr.mxu0 0.0
    %1068 = vmatpush1.msra.mxu0 0.0
    %1069 = vmatprep.subr.mxu0 0.0
    %1070 = vmatpush1.msra.mxu0 0.0
    %1071 = vmatprep.subr.mxu0 0.0
    %1072 = vmatpush1.msra.mxu0 0.0
    %1073 = vmatprep.subr.mxu0 0.0
    %1074 = vmatpush1.msra.mxu0 0.0
    %1075 = vmatprep.subr.mxu0 0.0
    %1076 = vmatpush1.msra.mxu0 %v1041
    %1077 = vmatprep.subr.mxu0 0.0
    %1078 = vmatpush1.msra.mxu0 %v1040
    %1079 = vmatprep.subr.mxu0 0.0
    %1080 = vmatpush1.msra.mxu0 %v1039
    %1081 = vmatprep.subr.mxu0 0.0
    %1082 = vmatpush1.msra.mxu0 %v1038
    %1083 = vmatprep.subr.mxu0 0.0
    %1084 = vmatpush2.msra.mxu0 0.0
    %1085 = vmatprep.subr.mxu0 0.0
    %1086 = vmatpush2.msra.mxu0 0.0
    %1087 = vmatprep.subr.mxu0 0.0
    %1088 = vmatpush2.msra.mxu0 0.0
    %1089 = vmatprep.subr.mxu0 0.0
    %1090 = vmatpush2.msra.mxu0 0.0
    %1091 = vmatprep.subr.mxu0 0.0
    %1092 = vmatpush2.msra.mxu0 0.0
    %1093 = vmatprep.subr.mxu0 0.0
    %1094 = vmatpush2.msra.mxu0 0.0
    %1095 = vmatprep.subr.mxu0 0.0
    %1096 = vmatpush2.msra.mxu0 0.0
    %1097 = vmatprep.subr.mxu0 0.0
    %1098 = vmatpush2.msra.mxu0 0.0
    %1099 = vmatprep.subr.mxu0 0.0
    %1100 = vmatpush2.msra.mxu0 0.0
    %1101 = vmatprep.subr.mxu0 0.0
    %1102 = vmatpush2.msra.mxu0 0.0
    %1103 = vmatprep.subr.mxu0 0.0
    %1104 = vmatpush2.msra.mxu0 0.0
    %1105 = vmatprep.subr.mxu0 0.0
    %1106 = vmatpush2.msra.mxu0 0.0
    %1107 = vmatprep.subr.mxu0 0.0
    %1108 = vmatpush2.msra.mxu0 0.0
    %1109 = vmatprep.subr.mxu0 0.0
    %1110 = vmatpush2.msra.mxu0 0.0
    %1111 = vmatprep.subr.mxu0 0.0
    %1112 = vmatpush2.msra.mxu0 0.0
    %1113 = vmatprep.subr.mxu0 0.0
    %1114 = vmatpush2.msra.mxu0 0.0
    %1115 = vmatprep.mubr.f32.mxu0 0.0
    %1116 = vmatmul.mubr.f32.gmra.mxu0 %v1049
    %v1117 = vpop.f32.mrf.mxu0
    %v1118 = vadd.f32 %v1044, %v1117
    %v1119 = vpop.f32.mrf.mxu0
    %1120 = vdwg.mxu0
    %v1121 = vld [vmem:[%s7 + $0x21] sm:$0x1]
    %v1122 = vstv %s1037
    %v1123 = vmul.f32 %v1122, %v1121
    %v1124 = vadd.f32 %v1118, %v1123
    %v1125 = vld [vmem:[%s7 + $0x22] sm:$0x1]
    %v1126 = vadd.f32 %v1124, %v1125
    %vm1127 = vcmask 24576
    %1128 = vst.msk [vmem:[#allocation9] sm:$0x1] %vm1127, %v1126
    // Predicated region
    $region46: #{tpu_custom_call.1} parent=1 // pred_check
      _
    $region47: #{tpu_custom_call.1} parent=1 // pred_check_branch
      %1130 = sbr.rel (0) target = $region49
    $region48: #{tpu_custom_call.1} parent=1 // pred_region
      %s1132 = ssub.s32 16, 16
      %1133 = vsyncadd [#allocation4], %s1132
      %s1135 = sshll.u32 [#allocation9], 4
      %s1136 = int_to_ptr.vmem [resolvable:$true] %s1135
      %1138 = dma.vmem_to_hbm [thread:$0]  %s1136, 16, %s8, [#allocation4]
    $region49: #{tpu_custom_call.1} parent=1 // pred_fallthru
      _
    // Predicated region
    $region50: #{tpu_custom_call.1} parent=1 // pred_check
      _
    $region51: #{tpu_custom_call.1} parent=1 // pred_check_branch
      %1140 = sbr.rel (0) target = $region53
    $region52: #{tpu_custom_call.1} parent=1 // pred_region
      %1141 = dma.done [#allocation4], 16
    $region53: #{tpu_custom_call.1} parent=1 // pred_fallthru
      _
    %1142 = vsyncpa [#allocation3], 1
    %1143 = vsyncpa [#allocation8], 1
    %1144 = vsyncpa [#allocation4], 1
    %1145 = vsyncpa [#allocation5], 1

</llo_original>
